<compile_context>
chip_gen: v7x
topology: tpu7x:2x2x1
jax: 0.10.0
libtpu: 0.0.40
codegen_flags: <defaults>
</compile_context>

<pallas_src>
import math

import jax
import jax.numpy as jnp
from jax.experimental import pallas as pl
from jax.experimental.pallas import tpu as pltpu


# ----------------------------------------------------------------------------
# Fused MHA kernel: one grid step = Bt batch elements.
# ----------------------------------------------------------------------------
def make_fused_mha(B, L, d_model, n_head, block_b):
    assert d_model % n_head == 0
    assert B % block_b == 0
    D = d_model // n_head
    inv_heads = 1.0 / n_head
    Bt = block_b
    M = Bt * L  # rows fed to the projection / output matmuls per grid step

    def kernel(x_ref, wqkv_ref, bqkv_ref, wc_ref, bc_ref, out_ref, attn_ref):
        # (Bt, L, d_model) -> (Bt*L, d_model): merge leading dims so the
        # projection matmul sees a tall M dimension (fills the MXU better and
        # amortizes fixed per-step cost over Bt batch elements).
        x2d = x_ref[...].reshape(M, d_model).astype(jnp.float32)

        # Fused Q/K/V projection.  The 1/sqrt(d_head) attention scale is
        # already folded into the Q columns of wqkv/bqkv by prepare_params().
        qkv = (
            jnp.dot(x2d, wqkv_ref[...], preferred_element_type=jnp.float32)
            + bqkv_ref[...]
        )                                                    # (Bt*L, 3*d_model)

        wc = wc_ref[...]                                     # (d_model, d_model)

        out_acc = jnp.zeros((M, d_model), jnp.float32)
        attn_acc = jnp.zeros((Bt, L, L), jnp.float32)

        # Static unroll over heads: n_head is small and all intermediates fit
        # in vregs at this size.  At real n_head/L switch to lax.fori_loop +
        # pltpu.VMEM scratch accumulators (and 128-aligned d_head) to keep
        # vreg pressure flat.
        for h in range(n_head):
            q_h = qkv[:, h * D:(h + 1) * D].reshape(Bt, L, D)
            k_h = qkv[:, d_model + h * D:d_model + (h + 1) * D].reshape(Bt, L, D)
            v_h = qkv[:, 2 * d_model + h * D:2 * d_model + (h + 1) * D].reshape(Bt, L, D)

            # q @ k^T batched over the Bt sub-batch; contracts the last dim of
            # both operands (no explicit transpose).  Scale already folded in.
            s = jnp.einsum("bqd,bkd->bqk", q_h, k_h,
                           preferred_element_type=jnp.float32)  # (Bt, L, L)

            # Numerically-stable softmax along the last axis (nn.Softmax(dim=-1)).
            s = s - jnp.max(s, axis=-1, keepdims=True)
            p = jnp.exp(s)
            denom = jnp.sum(p, axis=-1, keepdims=True)
            r = pl.reciprocal(denom, approx=True)   # EUP slot, nearly free
            r = r * (2.0 - denom * r)               # one Newton step -> ~exact f32
            p = p * r

            attn_acc = attn_acc + p

            o_h = jnp.einsum("bqk,bkd->bqd", p, v_h,
                             preferred_element_type=jnp.float32)  # (Bt, L, D)
            # Head-concat + output projection folded into a per-head accumulation:
            # out = b_c + sum_h o_h @ wc[h*D:(h+1)*D, :]
            out_acc = out_acc + jnp.dot(
                o_h.reshape(M, D), wc[h * D:(h + 1) * D, :],
                preferred_element_type=jnp.float32,
            )

        out2d = out_acc + bc_ref[...]
        out_ref[...] = out2d.reshape(Bt, L, d_model).astype(out_ref.dtype)
        attn_ref[...] = (attn_acc * inv_heads).astype(attn_ref.dtype)

    # Advisory cost model: QKV proj + (q@k^T, p@v) per head + output proj.
    flops = (2 * B * L * d_model * 3 * d_model       # x @ wqkv
             + 4 * B * L * L * d_model               # q@k^T and p@v over all heads
             + 2 * B * L * d_model * d_model)        # o @ w_concat
    transcendentals = B * n_head * L * L             # exp in softmax
    bytes_accessed = 4 * (B * L * d_model                          # x
                          + 3 * d_model * d_model + 3 * d_model    # wqkv, bqkv
                          + d_model * d_model + d_model            # wc, bc
                          + B * L * d_model + B * L * L)           # out, attn

    # Grid-invariant operands (weights/biases): whole-array VMEM residents,
    # not part of the per-step tile pipeline (no double-buffered tile churn).
    weight_spec = pl.BlockSpec(memory_space=pltpu.MemorySpace.VMEM)

    def run(x, wqkv, bqkv, wc, bc):
        return pl.pallas_call(
            kernel,
            out_shape=(
                jax.ShapeDtypeStruct((B, L, d_model), jnp.float32),
                jax.ShapeDtypeStruct((B, L, L), jnp.float32),
            ),
            grid=(B // Bt,),
            in_specs=[
                pl.BlockSpec((Bt, L, d_model), lambda b: (b, 0, 0)),
                weight_spec,   # wqkv
                weight_spec,   # bqkv
                weight_spec,   # wc
                weight_spec,   # bc
            ],
            out_specs=(
                pl.BlockSpec((Bt, L, d_model), lambda b: (b, 0, 0)),
                pl.BlockSpec((Bt, L, L), lambda b: (b, 0, 0)),
            ),
            compiler_params=pltpu.CompilerParams(
                dimension_semantics=("parallel",),
            ),
            cost_estimate=pl.CostEstimate(
                flops=flops,
                transcendentals=transcendentals,
                bytes_accessed=bytes_accessed,
            ),
        )(x, wqkv, bqkv, wc, bc)

    return run


# ----------------------------------------------------------------------------
# One-time parameter preparation (hoisted out of the per-forward path).
# ----------------------------------------------------------------------------
def prepare_params(params, n_head):
    """Fold 1/sqrt(d_head) into w_q/b_q and concatenate Q/K/V projections so
    the kernel does a single [d_model, 3*d_model] projection matmul.
    Call once (e.g. at module init), not per forward."""
    d_model = params["wq"].shape[0]
    inv_scale = 1.0 / math.sqrt(d_model // n_head)
    wqkv = jnp.concatenate(
        [params["wq"] * inv_scale, params["wk"], params["wv"]], axis=1)
    bqkv = jnp.concatenate(
        [params["bq"] * inv_scale, params["bk"], params["bv"]], axis=1)
    return {"wqkv": wqkv, "bqkv": bqkv, "wc": params["wc"], "bc": params["bc"]}


def _pick_block_b(B, L, target_rows=256):
    """Largest divisor of B with block_b * L <= target_rows (MXU M tile).
    At realistic L (>=256) this is 1, keeping a multi-step parallel grid."""
    bt = max(1, min(B, target_rows // max(L, 1)))
    while B % bt:
        bt -= 1
    return bt


# ----------------------------------------------------------------------------
# MultiHeadAttention3 forward (wrapper)
# ----------------------------------------------------------------------------
def multi_head_attention3(x, fused_params, n_head):
    B, L, d_model = x.shape
    block_b = _pick_block_b(B, L)
    run = make_fused_mha(B, L, d_model, n_head, block_b)
    out, attn = run(x, fused_params["wqkv"], fused_params["bqkv"],
                    fused_params["wc"], fused_params["bc"])
    return out, attn


# ----------------------------------------------------------------------------
# Pure-JAX reference for validation (mirrors the PyTorch module exactly)
# ----------------------------------------------------------------------------
def reference(x, params, n_head):
    B, L, d_model = x.shape
    d_head = d_model // n_head
    q = x @ params["wq"] + params["bq"][0]
    k = x @ params["wk"] + params["bk"][0]
    v = x @ params["wv"] + params["bv"][0]

    def split(t):
        return t.reshape(B, L, n_head, d_head).transpose(0, 2, 1, 3)

    qh, kh, vh = split(q), split(k), split(v)
    score = jnp.einsum("bhqd,bhkd->bhqk", qh, kh) / math.sqrt(d_head)
    score = jax.nn.softmax(score, axis=-1)
    out_h = jnp.einsum("bhqk,bhkd->bhqd", score, vh)
    out = out_h.transpose(0, 2, 1, 3).reshape(B, L, d_model)
    out = out @ params["wc"] + params["bc"][0]
    attn = jnp.mean(score, axis=1)
    return out, attn


if __name__ == "__main__":
    B, L, d_model, n_head = 2, 8, 32, 4

    key = jax.random.PRNGKey(0)
    ks = jax.random.split(key, 9)
    bound = 1.0 / math.sqrt(d_model)  # nn.Linear-style uniform init

    def uinit(k, shape):
        return jax.random.uniform(
            k, shape, dtype=jnp.float32, minval=-bound, maxval=bound
        )

    params = {
        "wq": uinit(ks[0], (d_model, d_model)),
        "bq": uinit(ks[1], (1, d_model)),
        "wk": uinit(ks[2], (d_model, d_model)),
        "bk": uinit(ks[3], (1, d_model)),
        "wv": uinit(ks[4], (d_model, d_model)),
        "bv": uinit(ks[5], (1, d_model)),
        "wc": uinit(ks[6], (d_model, d_model)),
        "bc": uinit(ks[7], (1, d_model)),
    }
    x = jax.random.normal(ks[8], (B, L, d_model), dtype=jnp.float32)

    fused = prepare_params(params, n_head)          # one-time weight prep
    out, attn = multi_head_attention3(x, fused, n_head)
    out, attn = jax.block_until_ready((out, attn))

    out_ref, attn_ref = reference(x, params, n_head)
    assert out.shape == (B, L, d_model) and attn.shape == (B, L, L)
    # Tolerance allows for the (Newton-refined) approximate-reciprocal softmax.
    assert jnp.allclose(out, out_ref, atol=5e-4, rtol=5e-4)
    assert jnp.allclose(attn, attn_ref, atol=5e-4, rtol=5e-4)

    print("KERNEL_OK")
</pallas_src>

<mosaic_0001>
module attributes {stable_mosaic.version = 11 : i64} {
  func.func @kernel(%arg0: i32, %arg1: memref<2x8x32xf32, #tpu.memory_space<vmem>>, %arg2: memref<32x96xf32, #tpu.memory_space<vmem>>, %arg3: memref<1x96xf32, #tpu.memory_space<vmem>>, %arg4: memref<32x32xf32, #tpu.memory_space<vmem>>, %arg5: memref<1x32xf32, #tpu.memory_space<vmem>>, %arg6: memref<2x8x32xf32, #tpu.memory_space<vmem>>, %arg7: memref<2x8x8xf32, #tpu.memory_space<vmem>>) attributes {dimension_semantics = [#tpu.dimension_semantics<parallel>], iteration_bounds = array<i64: 1>, scalar_prefetch = 0 : i64, scratch_operands = 0 : i64, tpu.core_type = #tpu.core_type<tc>, window_params = [{transform_indices = @transform_0, window_bounds = array<i64: 2, 8, 32>}, {pipeline_mode = #tpu.pipeline_mode<synchronous>, transform_indices = @transform_1, window_bounds = array<i64: 32, 96>}, {pipeline_mode = #tpu.pipeline_mode<synchronous>, transform_indices = @transform_2, window_bounds = array<i64: 1, 96>}, {pipeline_mode = #tpu.pipeline_mode<synchronous>, transform_indices = @transform_3, window_bounds = array<i64: 32, 32>}, {pipeline_mode = #tpu.pipeline_mode<synchronous>, transform_indices = @transform_4, window_bounds = array<i64: 1, 32>}, {transform_indices = @transform_5, window_bounds = array<i64: 2, 8, 32>}, {transform_indices = @transform_6, window_bounds = array<i64: 2, 8, 8>}]} {
    %c0 = arith.constant 0 : index
    %c0_0 = arith.constant 0 : index
    %c0_1 = arith.constant 0 : index
    %0 = vector.load %arg1[%c0, %c0_0, %c0_1] : memref<2x8x32xf32, #tpu.memory_space<vmem>>, vector<2x8x32xf32>
    %1 = vector.shape_cast %0 : vector<2x8x32xf32> to vector<16x32xf32>
    %c0_2 = arith.constant 0 : index
    %c0_3 = arith.constant 0 : index
    %2 = vector.load %arg2[%c0_2, %c0_3] : memref<32x96xf32, #tpu.memory_space<vmem>>, vector<32x96xf32>
    %cst = arith.constant dense<0.000000e+00> : vector<16x96xf32>
    %3 = tpu.matmul %1, %2, %cst {dimension_numbers = #tpu.dot_dimension_numbers<[1], [0], [0], [1], [0, 0, 1, 1], [], []>} : vector<16x32xf32>, vector<32x96xf32>, vector<16x96xf32> -> vector<16x96xf32>
    %c0_4 = arith.constant 0 : index
    %c0_5 = arith.constant 0 : index
    %4 = vector.load %arg3[%c0_4, %c0_5] : memref<1x96xf32, #tpu.memory_space<vmem>>, vector<1x96xf32>
    %5 = vector.broadcast %4 : vector<1x96xf32> to vector<16x96xf32>
    %6 = arith.addf %3, %5 : vector<16x96xf32>
    %c0_6 = arith.constant 0 : index
    %c0_7 = arith.constant 0 : index
    %7 = vector.load %arg4[%c0_6, %c0_7] : memref<32x32xf32, #tpu.memory_space<vmem>>, vector<32x32xf32>
    %cst_8 = arith.constant 0.000000e+00 : f32
    %8 = vector.broadcast %cst_8 : f32 to vector<16x32xf32>
    %cst_9 = arith.constant 0.000000e+00 : f32
    %9 = vector.broadcast %cst_9 : f32 to vector<2x8x8xf32>
    %10 = vector.extract_strided_slice %6 {offsets = [0, 0], sizes = [16, 8], strides = [1, 1]} : vector<16x96xf32> to vector<16x8xf32>
    %11 = vector.shape_cast %10 : vector<16x8xf32> to vector<2x8x8xf32>
    %12 = vector.extract_strided_slice %6 {offsets = [0, 32], sizes = [16, 8], strides = [1, 1]} : vector<16x96xf32> to vector<16x8xf32>
    %13 = vector.shape_cast %12 : vector<16x8xf32> to vector<2x8x8xf32>
    %14 = vector.extract_strided_slice %6 {offsets = [0, 64], sizes = [16, 8], strides = [1, 1]} : vector<16x96xf32> to vector<16x8xf32>
    %15 = vector.shape_cast %14 : vector<16x8xf32> to vector<2x8x8xf32>
    "tpu.trace_start"() <{level = 10 : i32, message = "bqd,bkd->bqk"}> : () -> ()
    %cst_10 = arith.constant dense<0.000000e+00> : vector<2x8x8xf32>
    %16 = tpu.matmul %11, %13, %cst_10 {dimension_numbers = #tpu.dot_dimension_numbers<[2], [2], [1], [1], [0, 0, 0, 1, 1, 1], [0], [0]>} : vector<2x8x8xf32>, vector<2x8x8xf32>, vector<2x8x8xf32> -> vector<2x8x8xf32>
    "tpu.trace_stop"() : () -> ()
    %cst_11 = arith.constant dense<0xFF800000> : vector<2x8xf32>
    %17 = vector.multi_reduction <maximumf>, %16, %cst_11 [2] : vector<2x8x8xf32> to vector<2x8xf32>
    %18 = vector.shape_cast %17 : vector<2x8xf32> to vector<2x8x1xf32>
    %19 = vector.broadcast %18 : vector<2x8x1xf32> to vector<2x8x8xf32>
    %20 = arith.subf %16, %19 : vector<2x8x8xf32>
    %21 = math.exp %20 : vector<2x8x8xf32>
    %cst_12 = arith.constant dense<0.000000e+00> : vector<2x8xf32>
    %22 = vector.multi_reduction <add>, %21, %cst_12 [2] : vector<2x8x8xf32> to vector<2x8xf32>
    %23 = vector.shape_cast %22 : vector<2x8xf32> to vector<2x8x1xf32>
    %24 = tpu.reciprocal %23 {approx = true} : vector<2x8x1xf32> -> vector<2x8x1xf32>
    %25 = arith.mulf %23, %24 : vector<2x8x1xf32>
    %cst_13 = arith.constant 2.000000e+00 : f32
    %26 = vector.broadcast %cst_13 : f32 to vector<2x8x1xf32>
    %27 = arith.subf %26, %25 : vector<2x8x1xf32>
    %28 = arith.mulf %24, %27 : vector<2x8x1xf32>
    %29 = vector.broadcast %28 : vector<2x8x1xf32> to vector<2x8x8xf32>
    %30 = arith.mulf %21, %29 : vector<2x8x8xf32>
    %31 = arith.addf %9, %30 : vector<2x8x8xf32>
    "tpu.trace_start"() <{level = 10 : i32, message = "bqk,bkd->bqd"}> : () -> ()
    %cst_14 = arith.constant dense<0.000000e+00> : vector<2x8x8xf32>
    %32 = tpu.matmul %30, %15, %cst_14 {dimension_numbers = #tpu.dot_dimension_numbers<[2], [1], [1], [2], [0, 0, 0, 1, 1, 2], [0], [0]>} : vector<2x8x8xf32>, vector<2x8x8xf32>, vector<2x8x8xf32> -> vector<2x8x8xf32>
    "tpu.trace_stop"() : () -> ()
    %33 = vector.shape_cast %32 : vector<2x8x8xf32> to vector<16x8xf32>
    %34 = vector.extract_strided_slice %7 {offsets = [0, 0], sizes = [8, 32], strides = [1, 1]} : vector<32x32xf32> to vector<8x32xf32>
    %cst_15 = arith.constant dense<0.000000e+00> : vector<16x32xf32>
    %35 = tpu.matmul %33, %34, %cst_15 {dimension_numbers = #tpu.dot_dimension_numbers<[1], [0], [0], [1], [0, 0, 1, 1], [], []>} : vector<16x8xf32>, vector<8x32xf32>, vector<16x32xf32> -> vector<16x32xf32>
    %36 = arith.addf %8, %35 : vector<16x32xf32>
    %37 = vector.extract_strided_slice %6 {offsets = [0, 8], sizes = [16, 8], strides = [1, 1]} : vector<16x96xf32> to vector<16x8xf32>
    %38 = vector.shape_cast %37 : vector<16x8xf32> to vector<2x8x8xf32>
    %39 = vector.extract_strided_slice %6 {offsets = [0, 40], sizes = [16, 8], strides = [1, 1]} : vector<16x96xf32> to vector<16x8xf32>
    %40 = vector.shape_cast %39 : vector<16x8xf32> to vector<2x8x8xf32>
    %41 = vector.extract_strided_slice %6 {offsets = [0, 72], sizes = [16, 8], strides = [1, 1]} : vector<16x96xf32> to vector<16x8xf32>
    %42 = vector.shape_cast %41 : vector<16x8xf32> to vector<2x8x8xf32>
    "tpu.trace_start"() <{level = 10 : i32, message = "bqd,bkd->bqk"}> : () -> ()
    %cst_16 = arith.constant dense<0.000000e+00> : vector<2x8x8xf32>
    %43 = tpu.matmul %38, %40, %cst_16 {dimension_numbers = #tpu.dot_dimension_numbers<[2], [2], [1], [1], [0, 0, 0, 1, 1, 1], [0], [0]>} : vector<2x8x8xf32>, vector<2x8x8xf32>, vector<2x8x8xf32> -> vector<2x8x8xf32>
    "tpu.trace_stop"() : () -> ()
    %cst_17 = arith.constant dense<0xFF800000> : vector<2x8xf32>
    %44 = vector.multi_reduction <maximumf>, %43, %cst_17 [2] : vector<2x8x8xf32> to vector<2x8xf32>
    %45 = vector.shape_cast %44 : vector<2x8xf32> to vector<2x8x1xf32>
    %46 = vector.broadcast %45 : vector<2x8x1xf32> to vector<2x8x8xf32>
    %47 = arith.subf %43, %46 : vector<2x8x8xf32>
    %48 = math.exp %47 : vector<2x8x8xf32>
    %cst_18 = arith.constant dense<0.000000e+00> : vector<2x8xf32>
    %49 = vector.multi_reduction <add>, %48, %cst_18 [2] : vector<2x8x8xf32> to vector<2x8xf32>
    %50 = vector.shape_cast %49 : vector<2x8xf32> to vector<2x8x1xf32>
    %51 = tpu.reciprocal %50 {approx = true} : vector<2x8x1xf32> -> vector<2x8x1xf32>
    %52 = arith.mulf %50, %51 : vector<2x8x1xf32>
    %cst_19 = arith.constant 2.000000e+00 : f32
    %53 = vector.broadcast %cst_19 : f32 to vector<2x8x1xf32>
    %54 = arith.subf %53, %52 : vector<2x8x1xf32>
    %55 = arith.mulf %51, %54 : vector<2x8x1xf32>
    %56 = vector.broadcast %55 : vector<2x8x1xf32> to vector<2x8x8xf32>
    %57 = arith.mulf %48, %56 : vector<2x8x8xf32>
    %58 = arith.addf %31, %57 : vector<2x8x8xf32>
    "tpu.trace_start"() <{level = 10 : i32, message = "bqk,bkd->bqd"}> : () -> ()
    %cst_20 = arith.constant dense<0.000000e+00> : vector<2x8x8xf32>
    %59 = tpu.matmul %57, %42, %cst_20 {dimension_numbers = #tpu.dot_dimension_numbers<[2], [1], [1], [2], [0, 0, 0, 1, 1, 2], [0], [0]>} : vector<2x8x8xf32>, vector<2x8x8xf32>, vector<2x8x8xf32> -> vector<2x8x8xf32>
    "tpu.trace_stop"() : () -> ()
    %60 = vector.shape_cast %59 : vector<2x8x8xf32> to vector<16x8xf32>
    %61 = vector.extract_strided_slice %7 {offsets = [8, 0], sizes = [8, 32], strides = [1, 1]} : vector<32x32xf32> to vector<8x32xf32>
    %cst_21 = arith.constant dense<0.000000e+00> : vector<16x32xf32>
    %62 = tpu.matmul %60, %61, %cst_21 {dimension_numbers = #tpu.dot_dimension_numbers<[1], [0], [0], [1], [0, 0, 1, 1], [], []>} : vector<16x8xf32>, vector<8x32xf32>, vector<16x32xf32> -> vector<16x32xf32>
    %63 = arith.addf %36, %62 : vector<16x32xf32>
    %64 = vector.extract_strided_slice %6 {offsets = [0, 16], sizes = [16, 8], strides = [1, 1]} : vector<16x96xf32> to vector<16x8xf32>
    %65 = vector.shape_cast %64 : vector<16x8xf32> to vector<2x8x8xf32>
    %66 = vector.extract_strided_slice %6 {offsets = [0, 48], sizes = [16, 8], strides = [1, 1]} : vector<16x96xf32> to vector<16x8xf32>
    %67 = vector.shape_cast %66 : vector<16x8xf32> to vector<2x8x8xf32>
    %68 = vector.extract_strided_slice %6 {offsets = [0, 80], sizes = [16, 8], strides = [1, 1]} : vector<16x96xf32> to vector<16x8xf32>
    %69 = vector.shape_cast %68 : vector<16x8xf32> to vector<2x8x8xf32>
    "tpu.trace_start"() <{level = 10 : i32, message = "bqd,bkd->bqk"}> : () -> ()
    %cst_22 = arith.constant dense<0.000000e+00> : vector<2x8x8xf32>
    %70 = tpu.matmul %65, %67, %cst_22 {dimension_numbers = #tpu.dot_dimension_numbers<[2], [2], [1], [1], [0, 0, 0, 1, 1, 1], [0], [0]>} : vector<2x8x8xf32>, vector<2x8x8xf32>, vector<2x8x8xf32> -> vector<2x8x8xf32>
    "tpu.trace_stop"() : () -> ()
    %cst_23 = arith.constant dense<0xFF800000> : vector<2x8xf32>
    %71 = vector.multi_reduction <maximumf>, %70, %cst_23 [2] : vector<2x8x8xf32> to vector<2x8xf32>
    %72 = vector.shape_cast %71 : vector<2x8xf32> to vector<2x8x1xf32>
    %73 = vector.broadcast %72 : vector<2x8x1xf32> to vector<2x8x8xf32>
    %74 = arith.subf %70, %73 : vector<2x8x8xf32>
    %75 = math.exp %74 : vector<2x8x8xf32>
    %cst_24 = arith.constant dense<0.000000e+00> : vector<2x8xf32>
    %76 = vector.multi_reduction <add>, %75, %cst_24 [2] : vector<2x8x8xf32> to vector<2x8xf32>
    %77 = vector.shape_cast %76 : vector<2x8xf32> to vector<2x8x1xf32>
    %78 = tpu.reciprocal %77 {approx = true} : vector<2x8x1xf32> -> vector<2x8x1xf32>
    %79 = arith.mulf %77, %78 : vector<2x8x1xf32>
    %cst_25 = arith.constant 2.000000e+00 : f32
    %80 = vector.broadcast %cst_25 : f32 to vector<2x8x1xf32>
    %81 = arith.subf %80, %79 : vector<2x8x1xf32>
    %82 = arith.mulf %78, %81 : vector<2x8x1xf32>
    %83 = vector.broadcast %82 : vector<2x8x1xf32> to vector<2x8x8xf32>
    %84 = arith.mulf %75, %83 : vector<2x8x8xf32>
    %85 = arith.addf %58, %84 : vector<2x8x8xf32>
    "tpu.trace_start"() <{level = 10 : i32, message = "bqk,bkd->bqd"}> : () -> ()
    %cst_26 = arith.constant dense<0.000000e+00> : vector<2x8x8xf32>
    %86 = tpu.matmul %84, %69, %cst_26 {dimension_numbers = #tpu.dot_dimension_numbers<[2], [1], [1], [2], [0, 0, 0, 1, 1, 2], [0], [0]>} : vector<2x8x8xf32>, vector<2x8x8xf32>, vector<2x8x8xf32> -> vector<2x8x8xf32>
    "tpu.trace_stop"() : () -> ()
    %87 = vector.shape_cast %86 : vector<2x8x8xf32> to vector<16x8xf32>
    %88 = vector.extract_strided_slice %7 {offsets = [16, 0], sizes = [8, 32], strides = [1, 1]} : vector<32x32xf32> to vector<8x32xf32>
    %cst_27 = arith.constant dense<0.000000e+00> : vector<16x32xf32>
    %89 = tpu.matmul %87, %88, %cst_27 {dimension_numbers = #tpu.dot_dimension_numbers<[1], [0], [0], [1], [0, 0, 1, 1], [], []>} : vector<16x8xf32>, vector<8x32xf32>, vector<16x32xf32> -> vector<16x32xf32>
    %90 = arith.addf %63, %89 : vector<16x32xf32>
    %91 = vector.extract_strided_slice %6 {offsets = [0, 24], sizes = [16, 8], strides = [1, 1]} : vector<16x96xf32> to vector<16x8xf32>
    %92 = vector.shape_cast %91 : vector<16x8xf32> to vector<2x8x8xf32>
    %93 = vector.extract_strided_slice %6 {offsets = [0, 56], sizes = [16, 8], strides = [1, 1]} : vector<16x96xf32> to vector<16x8xf32>
    %94 = vector.shape_cast %93 : vector<16x8xf32> to vector<2x8x8xf32>
    %95 = vector.extract_strided_slice %6 {offsets = [0, 88], sizes = [16, 8], strides = [1, 1]} : vector<16x96xf32> to vector<16x8xf32>
    %96 = vector.shape_cast %95 : vector<16x8xf32> to vector<2x8x8xf32>
    "tpu.trace_start"() <{level = 10 : i32, message = "bqd,bkd->bqk"}> : () -> ()
    %cst_28 = arith.constant dense<0.000000e+00> : vector<2x8x8xf32>
    %97 = tpu.matmul %92, %94, %cst_28 {dimension_numbers = #tpu.dot_dimension_numbers<[2], [2], [1], [1], [0, 0, 0, 1, 1, 1], [0], [0]>} : vector<2x8x8xf32>, vector<2x8x8xf32>, vector<2x8x8xf32> -> vector<2x8x8xf32>
    "tpu.trace_stop"() : () -> ()
    %cst_29 = arith.constant dense<0xFF800000> : vector<2x8xf32>
    %98 = vector.multi_reduction <maximumf>, %97, %cst_29 [2] : vector<2x8x8xf32> to vector<2x8xf32>
    %99 = vector.shape_cast %98 : vector<2x8xf32> to vector<2x8x1xf32>
    %100 = vector.broadcast %99 : vector<2x8x1xf32> to vector<2x8x8xf32>
    %101 = arith.subf %97, %100 : vector<2x8x8xf32>
    %102 = math.exp %101 : vector<2x8x8xf32>
    %cst_30 = arith.constant dense<0.000000e+00> : vector<2x8xf32>
    %103 = vector.multi_reduction <add>, %102, %cst_30 [2] : vector<2x8x8xf32> to vector<2x8xf32>
    %104 = vector.shape_cast %103 : vector<2x8xf32> to vector<2x8x1xf32>
    %105 = tpu.reciprocal %104 {approx = true} : vector<2x8x1xf32> -> vector<2x8x1xf32>
    %106 = arith.mulf %104, %105 : vector<2x8x1xf32>
    %cst_31 = arith.constant 2.000000e+00 : f32
    %107 = vector.broadcast %cst_31 : f32 to vector<2x8x1xf32>
    %108 = arith.subf %107, %106 : vector<2x8x1xf32>
    %109 = arith.mulf %105, %108 : vector<2x8x1xf32>
    %110 = vector.broadcast %109 : vector<2x8x1xf32> to vector<2x8x8xf32>
    %111 = arith.mulf %102, %110 : vector<2x8x8xf32>
    %112 = arith.addf %85, %111 : vector<2x8x8xf32>
    "tpu.trace_start"() <{level = 10 : i32, message = "bqk,bkd->bqd"}> : () -> ()
    %cst_32 = arith.constant dense<0.000000e+00> : vector<2x8x8xf32>
    %113 = tpu.matmul %111, %96, %cst_32 {dimension_numbers = #tpu.dot_dimension_numbers<[2], [1], [1], [2], [0, 0, 0, 1, 1, 2], [0], [0]>} : vector<2x8x8xf32>, vector<2x8x8xf32>, vector<2x8x8xf32> -> vector<2x8x8xf32>
    "tpu.trace_stop"() : () -> ()
    %114 = vector.shape_cast %113 : vector<2x8x8xf32> to vector<16x8xf32>
    %115 = vector.extract_strided_slice %7 {offsets = [24, 0], sizes = [8, 32], strides = [1, 1]} : vector<32x32xf32> to vector<8x32xf32>
    %cst_33 = arith.constant dense<0.000000e+00> : vector<16x32xf32>
    %116 = tpu.matmul %114, %115, %cst_33 {dimension_numbers = #tpu.dot_dimension_numbers<[1], [0], [0], [1], [0, 0, 1, 1], [], []>} : vector<16x8xf32>, vector<8x32xf32>, vector<16x32xf32> -> vector<16x32xf32>
    %117 = arith.addf %90, %116 : vector<16x32xf32>
    %c0_34 = arith.constant 0 : index
    %c0_35 = arith.constant 0 : index
    %118 = vector.load %arg5[%c0_34, %c0_35] : memref<1x32xf32, #tpu.memory_space<vmem>>, vector<1x32xf32>
    %119 = vector.broadcast %118 : vector<1x32xf32> to vector<16x32xf32>
    %120 = arith.addf %117, %119 : vector<16x32xf32>
    %121 = vector.shape_cast %120 : vector<16x32xf32> to vector<2x8x32xf32>
    %c0_36 = arith.constant 0 : index
    %c0_37 = arith.constant 0 : index
    %c0_38 = arith.constant 0 : index
    %122 = vector.load %arg6[%c0_36, %c0_37, %c0_38] : memref<2x8x32xf32, #tpu.memory_space<vmem>>, vector<2x8x32xf32>
    tpu.vector_store %arg6[%c0_36, %c0_37, %c0_38], %121 {strides = array<i32>} : memref<2x8x32xf32, #tpu.memory_space<vmem>>, vector<2x8x32xf32>,
    %cst_39 = arith.constant 2.500000e-01 : f32
    %123 = vector.broadcast %cst_39 : f32 to vector<2x8x8xf32>
    %124 = arith.mulf %112, %123 : vector<2x8x8xf32>
    %c0_40 = arith.constant 0 : index
    %c0_41 = arith.constant 0 : index
    %c0_42 = arith.constant 0 : index
    %125 = vector.load %arg7[%c0_40, %c0_41, %c0_42] : memref<2x8x8xf32, #tpu.memory_space<vmem>>, vector<2x8x8xf32>
    tpu.vector_store %arg7[%c0_40, %c0_41, %c0_42], %124 {strides = array<i32>} : memref<2x8x8xf32, #tpu.memory_space<vmem>>, vector<2x8x8xf32>,
    return
  }
  func.func @transform_0(%arg0: i32) -> (i32, i32, i32) {
    %c0_i32 = arith.constant 0 : i32
    %c0_i32_0 = arith.constant 0 : i32
    %c0_i32_1 = arith.constant 0 : i32
    return %arg0, %c0_i32, %c0_i32_0 : i32, i32, i32
  }
  func.func @transform_1(%arg0: i32) -> (i32, i32) {
    %c0_i32 = arith.constant 0 : i32
    %c0_i32_0 = arith.constant 0 : i32
    %c0_i32_1 = arith.constant 0 : i32
    return %c0_i32, %c0_i32_0 : i32, i32
  }
  func.func @transform_2(%arg0: i32) -> (i32, i32) {
    %c0_i32 = arith.constant 0 : i32
    %c0_i32_0 = arith.constant 0 : i32
    %c0_i32_1 = arith.constant 0 : i32
    return %c0_i32, %c0_i32_0 : i32, i32
  }
  func.func @transform_3(%arg0: i32) -> (i32, i32) {
    %c0_i32 = arith.constant 0 : i32
    %c0_i32_0 = arith.constant 0 : i32
    %c0_i32_1 = arith.constant 0 : i32
    return %c0_i32, %c0_i32_0 : i32, i32
  }
  func.func @transform_4(%arg0: i32) -> (i32, i32) {
    %c0_i32 = arith.constant 0 : i32
    %c0_i32_0 = arith.constant 0 : i32
    %c0_i32_1 = arith.constant 0 : i32
    return %c0_i32, %c0_i32_0 : i32, i32
  }
  func.func @transform_5(%arg0: i32) -> (i32, i32, i32) {
    %c0_i32 = arith.constant 0 : i32
    %c0_i32_0 = arith.constant 0 : i32
    %c0_i32_1 = arith.constant 0 : i32
    return %arg0, %c0_i32, %c0_i32_0 : i32, i32, i32
  }
  func.func @transform_6(%arg0: i32) -> (i32, i32, i32) {
    %c0_i32 = arith.constant 0 : i32
    %c0_i32_0 = arith.constant 0 : i32
    %c0_i32_1 = arith.constant 0 : i32
    return %arg0, %c0_i32, %c0_i32_0 : i32, i32, i32
  }
}

</mosaic_0001>

<llo_original>
// kernel: tpu_custom_call.1
$region0: #{tpu_custom_call.1}
  #allocation0 [shape = 'u32[]', space=smem, size = 0x4, offset = 0x4, fixed_abs, tag = 'smem constant byte address 0x4 - core index']
  #allocation1 [shape = 'u32[144,128]{1,0:T(1,128)}', space=vmem, size = 0x12000, scoped, tag = 'internal scratch']
  %s0 = inlined_call_operand.hbm [shape: f32[2,8,32], index: 0, kind: input, shape index: {}]
  %s1 = inlined_call_operand.hbm [shape: f32[32,96], index: 1, kind: input, shape index: {}]
  %s2 = inlined_call_operand.vmem [shape: f32[1,96], index: 2, kind: input, shape index: {}]
  %s3 = inlined_call_operand.hbm [shape: f32[32,32], index: 3, kind: input, shape index: {}]
  %s4 = inlined_call_operand.vmem [shape: f32[1,32], index: 4, kind: input, shape index: {}]
  %s5 = inlined_call_operand.hbm [shape: f32[2,8,32], index: 5, kind: output, shape index: {0}]
  %s6 = inlined_call_operand.hbm [shape: f32[2,8,8], index: 6, kind: output, shape index: {1}]
  %7 = xla_tuple %s5, %s6
  %s8 = sld [smem:[#allocation0]]
  $region50: #{tpu_custom_call.1} parent=0
    _
  %s10 = ssub.s32 1, %s8
  %s11 = scalar_select 0, %s10, %s8
  $region1: #{tpu_custom_call.1} parent=0
    #allocation2 [shape = 'u8[8192]{0}', space=vmem, size = 0x2000, scoped, tag = 'input window, operand 0, single buffered']
    #allocation3 [shape = 's32[1]{0}', space=sflag, size = 0x4, scoped, tag = 'scoped memory for tpu_custom_call.1']
    #allocation4 [shape = 's32[1]{0}', space=sflag, size = 0x4, scoped, tag = 'scoped memory for tpu_custom_call.1']
    #allocation5 [shape = 'u8[16384]{0}', space=vmem, size = 0x4000, scoped, tag = 'input window, operand 1, single buffered']
    #allocation6 [shape = 's32[1]{0}', space=sflag, size = 0x4, scoped, tag = 'scoped memory for tpu_custom_call.1']
    #allocation7 [shape = 'u8[16384]{0}', space=vmem, size = 0x4000, scoped, tag = 'input window, operand 3, single buffered']
    #allocation8 [shape = 'u8[8192]{0}', space=vmem, size = 0x2000, scoped, tag = 'output window, operand 0, single buffered']
    #allocation9 [shape = 'u8[8192]{0}', space=vmem, size = 0x2000, scoped, tag = 'output window, operand 1, single buffered']
    #allocation10 [shape = 's32[1]{0}', space=sflag, size = 0x4, scoped, tag = 'scoped memory for tpu_custom_call.1']
    %12 = vsyncpa [#allocation3], 0
    %13 = vsyncpa [#allocation6], 0
    %14 = vsyncpa [#allocation4], 0
    %15 = vsyncpa [#allocation10], 0
    // Predicated region
    $region2: #{tpu_custom_call.1} parent=1 // pred_check
      _
    $region3: #{tpu_custom_call.1} parent=1 // pred_check_branch
      %17 = sbr.rel (0) target = $region5
    $region4: #{tpu_custom_call.1} parent=1 // pred_region
      %s19 = ssub.s32 256, 256
      %20 = vsyncadd [#allocation3], %s19
      %s21 = sshll.u32 [#allocation2], 4
      %s22 = int_to_ptr.vmem [resolvable:$true] %s21
      %27 = dma.hbm_to_vmem [thread:$0]  %s0, 256, %s22, [#allocation3], 128, 128, 8
    $region5: #{tpu_custom_call.1} parent=1 // pred_fallthru
      _
    // Predicated region
    $region6: #{tpu_custom_call.1} parent=1 // pred_check
      _
    $region7: #{tpu_custom_call.1} parent=1 // pred_check_branch
      %29 = sbr.rel (0) target = $region9
    $region8: #{tpu_custom_call.1} parent=1 // pred_region
      %s31 = ssub.s32 512, 512
      %32 = vsyncadd [#allocation6], %s31
      %s33 = sshll.u32 [#allocation5], 4
      %s34 = int_to_ptr.vmem [resolvable:$true] %s33
      %39 = dma.hbm_to_vmem [thread:$0]  %s1, 512, %s34, [#allocation6], 128, 128, 8
    $region9: #{tpu_custom_call.1} parent=1 // pred_fallthru
      _
    // Predicated region
    $region10: #{tpu_custom_call.1} parent=1 // pred_check
      _
    $region11: #{tpu_custom_call.1} parent=1 // pred_check_branch
      %41 = sbr.rel (0) target = $region13
    $region12: #{tpu_custom_call.1} parent=1 // pred_region
      _
    $region13: #{tpu_custom_call.1} parent=1 // pred_fallthru
      _
    // Predicated region
    $region14: #{tpu_custom_call.1} parent=1 // pred_check
      _
    $region15: #{tpu_custom_call.1} parent=1 // pred_check_branch
      %43 = sbr.rel (0) target = $region17
    $region16: #{tpu_custom_call.1} parent=1 // pred_region
      %s45 = ssub.s32 512, 512
      %46 = vsyncadd [#allocation6], %s45
      %s47 = sshll.u32 [#allocation7], 4
      %s48 = int_to_ptr.vmem [resolvable:$true] %s47
      %53 = dma.hbm_to_vmem [thread:$0]  %s3, 512, %s48, [#allocation6], 128, 128, 8
    $region17: #{tpu_custom_call.1} parent=1 // pred_fallthru
      _
    // Predicated region
    $region18: #{tpu_custom_call.1} parent=1 // pred_check
      _
    $region19: #{tpu_custom_call.1} parent=1 // pred_check_branch
      %55 = sbr.rel (0) target = $region21
    $region20: #{tpu_custom_call.1} parent=1 // pred_region
      _
    $region21: #{tpu_custom_call.1} parent=1 // pred_fallthru
      _
    // Predicated region
    $region22: #{tpu_custom_call.1} parent=1 // pred_check
      _
    $region23: #{tpu_custom_call.1} parent=1 // pred_check_branch
      %57 = sbr.rel (0) target = $region25
    $region24: #{tpu_custom_call.1} parent=1 // pred_region
      %58 = dma.done [#allocation3], 256
    $region25: #{tpu_custom_call.1} parent=1 // pred_fallthru
      _
    // Predicated region
    $region26: #{tpu_custom_call.1} parent=1 // pred_check
      _
    $region27: #{tpu_custom_call.1} parent=1 // pred_check_branch
      %60 = sbr.rel (0) target = $region29
    $region28: #{tpu_custom_call.1} parent=1 // pred_region
      %61 = dma.done [#allocation6], 512
    $region29: #{tpu_custom_call.1} parent=1 // pred_fallthru
      _
    // Predicated region
    $region30: #{tpu_custom_call.1} parent=1 // pred_check
      _
    $region31: #{tpu_custom_call.1} parent=1 // pred_check_branch
      %63 = sbr.rel (0) target = $region33
    $region32: #{tpu_custom_call.1} parent=1 // pred_region
      %64 = dma.done [#allocation6], 512
    $region33: #{tpu_custom_call.1} parent=1 // pred_fallthru
      _
    %v65 = vld [vmem:[#allocation2] sm:$0xff]
    %v66 = vld [vmem:[#allocation2 + $0x8] sm:$0xff]
    %v67 = vld [vmem:[#allocation5] sm:$0xff]
    %v68 = vld [vmem:[#allocation5 + $0x8] sm:$0xff]
    %v69 = vld [vmem:[#allocation5 + $0x10] sm:$0xff]
    %v70 = vld [vmem:[#allocation5 + $0x18] sm:$0xff]
    %v71 = vld [vmem:[%s2] sm:$0x1]
    %v73 = vlaneseq
    %v74 = vshrl.u32 %v73, 7
    %v75 = vsub.s32 0, %v74
    %v76 = vrot.slane %v71, %v75
    %vm78 = vcmask 261120
    %v80 = vsel %vm78, %v65, 0
    %v83 = vsel %vm78, %v66, 0
    %85 = vmatprep.subr.mxu0 0.0
    %86 = vmatpush1.msra.mxu0 %v67
    %87 = vmatprep.subr.mxu0 0.0
    %88 = vmatpush1.msra.mxu0 %v68
    %89 = vmatprep.subr.mxu0 0.0
    %90 = vmatpush1.msra.mxu0 %v69
    %91 = vmatprep.subr.mxu0 0.0
    %92 = vmatpush1.msra.mxu0 %v70
    %93 = vmatprep.subr.mxu0 0.0
    %94 = vmatpush1.msra.mxu0 0.0
    %95 = vmatprep.subr.mxu0 0.0
    %96 = vmatpush1.msra.mxu0 0.0
    %97 = vmatprep.subr.mxu0 0.0
    %98 = vmatpush1.msra.mxu0 0.0
    %99 = vmatprep.subr.mxu0 0.0
    %100 = vmatpush1.msra.mxu0 0.0
    %101 = vmatprep.subr.mxu0 0.0
    %102 = vmatpush1.msra.mxu0 0.0
    %103 = vmatprep.subr.mxu0 0.0
    %104 = vmatpush1.msra.mxu0 0.0
    %105 = vmatprep.subr.mxu0 0.0
    %106 = vmatpush1.msra.mxu0 0.0
    %107 = vmatprep.subr.mxu0 0.0
    %108 = vmatpush1.msra.mxu0 0.0
    %109 = vmatprep.subr.mxu0 0.0
    %110 = vmatpush1.msra.mxu0 0.0
    %111 = vmatprep.subr.mxu0 0.0
    %112 = vmatpush1.msra.mxu0 0.0
    %113 = vmatprep.subr.mxu0 0.0
    %114 = vmatpush1.msra.mxu0 0.0
    %115 = vmatprep.subr.mxu0 0.0
    %116 = vmatpush1.msra.mxu0 0.0
    %117 = vmatprep.subr.mxu0 0.0
    %118 = vmatpush1.msra.mxu0 0.0
    %119 = vmatprep.subr.mxu0 0.0
    %120 = vmatpush1.msra.mxu0 0.0
    %121 = vmatprep.subr.mxu0 0.0
    %122 = vmatpush1.msra.mxu0 0.0
    %123 = vmatprep.subr.mxu0 0.0
    %124 = vmatpush1.msra.mxu0 0.0
    %125 = vmatprep.subr.mxu0 0.0
    %126 = vmatpush1.msra.mxu0 0.0
    %127 = vmatprep.subr.mxu0 0.0
    %128 = vmatpush1.msra.mxu0 0.0
    %129 = vmatprep.subr.mxu0 0.0
    %130 = vmatpush1.msra.mxu0 0.0
    %131 = vmatprep.subr.mxu0 0.0
    %132 = vmatpush1.msra.mxu0 0.0
    %133 = vmatprep.subr.mxu0 0.0
    %134 = vmatpush1.msra.mxu0 0.0
    %135 = vmatprep.subr.mxu0 0.0
    %136 = vmatpush1.msra.mxu0 0.0
    %137 = vmatprep.subr.mxu0 0.0
    %138 = vmatpush1.msra.mxu0 0.0
    %139 = vmatprep.subr.mxu0 0.0
    %140 = vmatpush1.msra.mxu0 0.0
    %141 = vmatprep.subr.mxu0 0.0
    %142 = vmatpush1.msra.mxu0 0.0
    %143 = vmatprep.subr.mxu0 0.0
    %144 = vmatpush1.msra.mxu0 0.0
    %145 = vmatprep.subr.mxu0 0.0
    %146 = vmatpush1.msra.mxu0 0.0
    %147 = vmatprep.subr.mxu0 0.0
    %148 = vmatpush1.msra.mxu0 0.0
    %149 = vmatprep.mubr.f32.mxu0 0.0
    %150 = vmatmul.mubr.f32.gmra.mrb[0].mxu0 %v80
    %v151 = vpop.f32.mrb[0].mxu0
    %v152 = vadd.f32 %v76, %v151
    %v153 = vpop.f32.mrb[0].mxu0
    %154 = vmatprep.mubr.f32.mxu0 0.0
    %155 = vmatmul.mubr.f32.gmra.mrb[0].mxu0 %v83
    %v156 = vpop.f32.mrb[0].mxu0
    %v157 = vadd.f32 %v76, %v156
    %v158 = vpop.f32.mrb[0].mxu0
    %159 = vdwg.mxu0
    %v160 = vld [vmem:[#allocation7] sm:$0xff]
    %v161 = vld [vmem:[#allocation7 + $0x8] sm:$0xff]
    %v162 = vld [vmem:[#allocation7 + $0x10] sm:$0xff]
    %v163 = vld [vmem:[#allocation7 + $0x18] sm:$0xff]
    %165 = vrot.lane.b32.xlu0 %v152, 96
    %v166 = vpop.permute.xlu0 %165
    %vm167 = vcmask 64512
    %v168 = vsel %vm167, %v152, 0
    %v170 = vsel %vm167, %v166, 0
    %172 = vmatprep.subr.mxu0 0.0
    %173 = vmatpush1.xpose.msra.mxu0 %v170
    %174 = vmatprep.subr.mxu0 0.0
    %175 = vmatpush1.xpose.msra.mxu0 0.0
    %176 = vmatprep.subr.mxu0 0.0
    %177 = vmatpush1.xpose.msra.mxu0 0.0
    %178 = vmatprep.subr.mxu0 0.0
    %179 = vmatpush1.xpose.msra.mxu0 0.0
    %180 = vmatprep.subr.mxu0 0.0
    %181 = vmatpush1.xpose.msra.mxu0 0.0
    %182 = vmatprep.subr.mxu0 0.0
    %183 = vmatpush1.xpose.msra.mxu0 0.0
    %184 = vmatprep.subr.mxu0 0.0
    %185 = vmatpush1.xpose.msra.mxu0 0.0
    %186 = vmatprep.subr.mxu0 0.0
    %187 = vmatpush1.xpose.msra.mxu0 0.0
    %188 = vmatprep.subr.mxu0 0.0
    %189 = vmatpush1.xpose.msra.mxu0 0.0
    %190 = vmatprep.subr.mxu0 0.0
    %191 = vmatpush1.xpose.msra.mxu0 0.0
    %192 = vmatprep.subr.mxu0 0.0
    %193 = vmatpush1.xpose.msra.mxu0 0.0
    %194 = vmatprep.subr.mxu0 0.0
    %195 = vmatpush1.xpose.msra.mxu0 0.0
    %196 = vmatprep.subr.mxu0 0.0
    %197 = vmatpush1.xpose.msra.mxu0 0.0
    %198 = vmatprep.subr.mxu0 0.0
    %199 = vmatpush1.xpose.msra.mxu0 0.0
    %200 = vmatprep.subr.mxu0 0.0
    %201 = vmatpush1.xpose.msra.mxu0 0.0
    %202 = vmatprep.subr.mxu0 0.0
    %203 = vmatpush1.xpose.msra.mxu0 0.0
    %204 = vmatprep.subr.mxu0 0.0
    %205 = vmatpush1.xpose.msra.mxu0 0.0
    %206 = vmatprep.subr.mxu0 0.0
    %207 = vmatpush1.xpose.msra.mxu0 0.0
    %208 = vmatprep.subr.mxu0 0.0
    %209 = vmatpush1.xpose.msra.mxu0 0.0
    %210 = vmatprep.subr.mxu0 0.0
    %211 = vmatpush1.xpose.msra.mxu0 0.0
    %212 = vmatprep.subr.mxu0 0.0
    %213 = vmatpush1.xpose.msra.mxu0 0.0
    %214 = vmatprep.subr.mxu0 0.0
    %215 = vmatpush1.xpose.msra.mxu0 0.0
    %216 = vmatprep.subr.mxu0 0.0
    %217 = vmatpush1.xpose.msra.mxu0 0.0
    %218 = vmatprep.subr.mxu0 0.0
    %219 = vmatpush1.xpose.msra.mxu0 0.0
    %220 = vmatprep.subr.mxu0 0.0
    %221 = vmatpush1.xpose.msra.mxu0 0.0
    %222 = vmatprep.subr.mxu0 0.0
    %223 = vmatpush1.xpose.msra.mxu0 0.0
    %224 = vmatprep.subr.mxu0 0.0
    %225 = vmatpush1.xpose.msra.mxu0 0.0
    %226 = vmatprep.subr.mxu0 0.0
    %227 = vmatpush1.xpose.msra.mxu0 0.0
    %228 = vmatprep.subr.mxu0 0.0
    %229 = vmatpush1.xpose.msra.mxu0 0.0
    %230 = vmatprep.subr.mxu0 0.0
    %231 = vmatpush1.xpose.msra.mxu0 0.0
    %232 = vmatprep.subr.mxu0 0.0
    %233 = vmatpush1.xpose.msra.mxu0 0.0
    %234 = vmatprep.subr.mxu0 0.0
    %235 = vmatpush1.xpose.msra.mxu0 0.0
    %236 = vmatprep.mubr.f32.mxu0 0.0
    %237 = vmatmul.mubr.f32.gmra.mrb[0].mxu0 %v168
    %v238 = vpop.f32.mrb[0].mxu0
    %v239 = vadd.f32 0.0, %v238
    %v240 = vpop.f32.mrb[0].mxu0
    %241 = vdwg.mxu0
    %243 = vrot.lane.b32.xlu0 %v157, 96
    %v244 = vpop.permute.xlu0 %243
    %v245 = vsel %vm167, %v157, 0
    %v247 = vsel %vm167, %v244, 0
    %249 = vmatprep.subr.mxu0 0.0
    %250 = vmatpush1.xpose.msra.mxu0 %v247
    %251 = vmatprep.subr.mxu0 0.0
    %252 = vmatpush1.xpose.msra.mxu0 0.0
    %253 = vmatprep.subr.mxu0 0.0
    %254 = vmatpush1.xpose.msra.mxu0 0.0
    %255 = vmatprep.subr.mxu0 0.0
    %256 = vmatpush1.xpose.msra.mxu0 0.0
    %257 = vmatprep.subr.mxu0 0.0
    %258 = vmatpush1.xpose.msra.mxu0 0.0
    %259 = vmatprep.subr.mxu0 0.0
    %260 = vmatpush1.xpose.msra.mxu0 0.0
    %261 = vmatprep.subr.mxu0 0.0
    %262 = vmatpush1.xpose.msra.mxu0 0.0
    %263 = vmatprep.subr.mxu0 0.0
    %264 = vmatpush1.xpose.msra.mxu0 0.0
    %265 = vmatprep.subr.mxu0 0.0
    %266 = vmatpush1.xpose.msra.mxu0 0.0
    %267 = vmatprep.subr.mxu0 0.0
    %268 = vmatpush1.xpose.msra.mxu0 0.0
    %269 = vmatprep.subr.mxu0 0.0
    %270 = vmatpush1.xpose.msra.mxu0 0.0
    %271 = vmatprep.subr.mxu0 0.0
    %272 = vmatpush1.xpose.msra.mxu0 0.0
    %273 = vmatprep.subr.mxu0 0.0
    %274 = vmatpush1.xpose.msra.mxu0 0.0
    %275 = vmatprep.subr.mxu0 0.0
    %276 = vmatpush1.xpose.msra.mxu0 0.0
    %277 = vmatprep.subr.mxu0 0.0
    %278 = vmatpush1.xpose.msra.mxu0 0.0
    %279 = vmatprep.subr.mxu0 0.0
    %280 = vmatpush1.xpose.msra.mxu0 0.0
    %281 = vmatprep.subr.mxu0 0.0
    %282 = vmatpush1.xpose.msra.mxu0 0.0
    %283 = vmatprep.subr.mxu0 0.0
    %284 = vmatpush1.xpose.msra.mxu0 0.0
    %285 = vmatprep.subr.mxu0 0.0
    %286 = vmatpush1.xpose.msra.mxu0 0.0
    %287 = vmatprep.subr.mxu0 0.0
    %288 = vmatpush1.xpose.msra.mxu0 0.0
    %289 = vmatprep.subr.mxu0 0.0
    %290 = vmatpush1.xpose.msra.mxu0 0.0
    %291 = vmatprep.subr.mxu0 0.0
    %292 = vmatpush1.xpose.msra.mxu0 0.0
    %293 = vmatprep.subr.mxu0 0.0
    %294 = vmatpush1.xpose.msra.mxu0 0.0
    %295 = vmatprep.subr.mxu0 0.0
    %296 = vmatpush1.xpose.msra.mxu0 0.0
    %297 = vmatprep.subr.mxu0 0.0
    %298 = vmatpush1.xpose.msra.mxu0 0.0
    %299 = vmatprep.subr.mxu0 0.0
    %300 = vmatpush1.xpose.msra.mxu0 0.0
    %301 = vmatprep.subr.mxu0 0.0
    %302 = vmatpush1.xpose.msra.mxu0 0.0
    %303 = vmatprep.subr.mxu0 0.0
    %304 = vmatpush1.xpose.msra.mxu0 0.0
    %305 = vmatprep.subr.mxu0 0.0
    %306 = vmatpush1.xpose.msra.mxu0 0.0
    %307 = vmatprep.subr.mxu0 0.0
    %308 = vmatpush1.xpose.msra.mxu0 0.0
    %309 = vmatprep.subr.mxu0 0.0
    %310 = vmatpush1.xpose.msra.mxu0 0.0
    %311 = vmatprep.subr.mxu0 0.0
    %312 = vmatpush1.xpose.msra.mxu0 0.0
    %313 = vmatprep.mubr.f32.mxu0 0.0
    %314 = vmatmul.mubr.f32.gmra.mrb[0].mxu0 %v245
    %v315 = vpop.f32.mrb[0].mxu0
    %v316 = vadd.f32 0.0, %v315
    %v317 = vpop.f32.mrb[0].mxu0
    %318 = vdwg.mxu0
    %v319 = vsel %vm167, %v239, -inf
    %320 = vmax.xlane.f32.xlu0 %v319
    %v321 = vpop.xlane.xlu0 %320
    %v322 = vsel %vm167, %v316, -inf
    %323 = vmax.xlane.f32.xlu0 %v322
    %v324 = vpop.xlane.xlu0 %323
    %v325 = vsub.f32 %v239, %v321
    %v326 = vsub.f32 %v316, %v324
    %v327 = vmul.f32 %v325, 1.442695
    %v328 = vpow.pop %v327
    %v329 = vmul.f32 %v326, 1.442695
    %v330 = vpow.pop %v329
    %v331 = vsel %vm167, %v328, 0.0
    %332 = vadd.xlane.f32.xlu0 %v331
    %v333 = vpop.xlane.xlu0 %332
    %v334 = vsel %vm167, %v330, 0.0
    %335 = vadd.xlane.f32.xlu0 %v334
    %v336 = vpop.xlane.xlu0 %335
    %v337 = vrcp.pop %v333
    %v338 = vrcp.pop %v336
    %v339 = vmul.f32 %v333, %v337
    %v340 = vmul.f32 %v336, %v338
    %v341 = vsub.f32 2.0, %v339
    %v342 = vsub.f32 2.0, %v340
    %v343 = vmul.f32 %v337, %v341
    %v344 = vmul.f32 %v338, %v342
    %v345 = vmul.f32 %v328, %v343
    %v346 = vmul.f32 %v330, %v344
    %v347 = vadd.f32 %v345, 0.0
    %v348 = vadd.f32 %v346, 0.0
    %349 = vrot.lane.b32.xlu0 %v152, 64
    %v350 = vpop.permute.xlu0 %349
    %v353 = vsel %vm167, %v345, 0
    %355 = vmatprep.subr.mxu0 0.0
    %356 = vmatpush1.msra.mxu0 %v350
    %357 = vmatprep.subr.mxu0 0.0
    %358 = vmatpush1.msra.mxu0 0.0
    %359 = vmatprep.subr.mxu0 0.0
    %360 = vmatpush1.msra.mxu0 0.0
    %361 = vmatprep.subr.mxu0 0.0
    %362 = vmatpush1.msra.mxu0 0.0
    %363 = vmatprep.subr.mxu0 0.0
    %364 = vmatpush1.msra.mxu0 0.0
    %365 = vmatprep.subr.mxu0 0.0
    %366 = vmatpush1.msra.mxu0 0.0
    %367 = vmatprep.subr.mxu0 0.0
    %368 = vmatpush1.msra.mxu0 0.0
    %369 = vmatprep.subr.mxu0 0.0
    %370 = vmatpush1.msra.mxu0 0.0
    %371 = vmatprep.subr.mxu0 0.0
    %372 = vmatpush1.msra.mxu0 0.0
    %373 = vmatprep.subr.mxu0 0.0
    %374 = vmatpush1.msra.mxu0 0.0
    %375 = vmatprep.subr.mxu0 0.0
    %376 = vmatpush1.msra.mxu0 0.0
    %377 = vmatprep.subr.mxu0 0.0
    %378 = vmatpush1.msra.mxu0 0.0
    %379 = vmatprep.subr.mxu0 0.0
    %380 = vmatpush1.msra.mxu0 0.0
    %381 = vmatprep.subr.mxu0 0.0
    %382 = vmatpush1.msra.mxu0 0.0
    %383 = vmatprep.subr.mxu0 0.0
    %384 = vmatpush1.msra.mxu0 0.0
    %385 = vmatprep.subr.mxu0 0.0
    %386 = vmatpush1.msra.mxu0 0.0
    %387 = vmatprep.subr.mxu0 0.0
    %388 = vmatpush1.msra.mxu0 0.0
    %389 = vmatprep.subr.mxu0 0.0
    %390 = vmatpush1.msra.mxu0 0.0
    %391 = vmatprep.subr.mxu0 0.0
    %392 = vmatpush1.msra.mxu0 0.0
    %393 = vmatprep.subr.mxu0 0.0
    %394 = vmatpush1.msra.mxu0 0.0
    %395 = vmatprep.subr.mxu0 0.0
    %396 = vmatpush1.msra.mxu0 0.0
    %397 = vmatprep.subr.mxu0 0.0
    %398 = vmatpush1.msra.mxu0 0.0
    %399 = vmatprep.subr.mxu0 0.0
    %400 = vmatpush1.msra.mxu0 0.0
    %401 = vmatprep.subr.mxu0 0.0
    %402 = vmatpush1.msra.mxu0 0.0
    %403 = vmatprep.subr.mxu0 0.0
    %404 = vmatpush1.msra.mxu0 0.0
    %405 = vmatprep.subr.mxu0 0.0
    %406 = vmatpush1.msra.mxu0 0.0
    %407 = vmatprep.subr.mxu0 0.0
    %408 = vmatpush1.msra.mxu0 0.0
    %409 = vmatprep.subr.mxu0 0.0
    %410 = vmatpush1.msra.mxu0 0.0
    %411 = vmatprep.subr.mxu0 0.0
    %412 = vmatpush1.msra.mxu0 0.0
    %413 = vmatprep.subr.mxu0 0.0
    %414 = vmatpush1.msra.mxu0 0.0
    %415 = vmatprep.subr.mxu0 0.0
    %416 = vmatpush1.msra.mxu0 0.0
    %417 = vmatprep.subr.mxu0 0.0
    %418 = vmatpush1.msra.mxu0 0.0
    %419 = vmatprep.mubr.f32.mxu0 0.0
    %420 = vmatmul.mubr.f32.gmra.mrb[0].mxu0 %v353
    %v421 = vpop.f32.mrb[0].mxu0
    %v422 = vadd.f32 0.0, %v421
    %v423 = vpop.f32.mrb[0].mxu0
    %424 = vdwg.mxu0
    %425 = vrot.lane.b32.xlu0 %v157, 64
    %v426 = vpop.permute.xlu0 %425
    %v429 = vsel %vm167, %v346, 0
    %431 = vmatprep.subr.mxu0 0.0
    %432 = vmatpush1.msra.mxu0 %v426
    %433 = vmatprep.subr.mxu0 0.0
    %434 = vmatpush1.msra.mxu0 0.0
    %435 = vmatprep.subr.mxu0 0.0
    %436 = vmatpush1.msra.mxu0 0.0
    %437 = vmatprep.subr.mxu0 0.0
    %438 = vmatpush1.msra.mxu0 0.0
    %439 = vmatprep.subr.mxu0 0.0
    %440 = vmatpush1.msra.mxu0 0.0
    %441 = vmatprep.subr.mxu0 0.0
    %442 = vmatpush1.msra.mxu0 0.0
    %443 = vmatprep.subr.mxu0 0.0
    %444 = vmatpush1.msra.mxu0 0.0
    %445 = vmatprep.subr.mxu0 0.0
    %446 = vmatpush1.msra.mxu0 0.0
    %447 = vmatprep.subr.mxu0 0.0
    %448 = vmatpush1.msra.mxu0 0.0
    %449 = vmatprep.subr.mxu0 0.0
    %450 = vmatpush1.msra.mxu0 0.0
    %451 = vmatprep.subr.mxu0 0.0
    %452 = vmatpush1.msra.mxu0 0.0
    %453 = vmatprep.subr.mxu0 0.0
    %454 = vmatpush1.msra.mxu0 0.0
    %455 = vmatprep.subr.mxu0 0.0
    %456 = vmatpush1.msra.mxu0 0.0
    %457 = vmatprep.subr.mxu0 0.0
    %458 = vmatpush1.msra.mxu0 0.0
    %459 = vmatprep.subr.mxu0 0.0
    %460 = vmatpush1.msra.mxu0 0.0
    %461 = vmatprep.subr.mxu0 0.0
    %462 = vmatpush1.msra.mxu0 0.0
    %463 = vmatprep.subr.mxu0 0.0
    %464 = vmatpush1.msra.mxu0 0.0
    %465 = vmatprep.subr.mxu0 0.0
    %466 = vmatpush1.msra.mxu0 0.0
    %467 = vmatprep.subr.mxu0 0.0
    %468 = vmatpush1.msra.mxu0 0.0
    %469 = vmatprep.subr.mxu0 0.0
    %470 = vmatpush1.msra.mxu0 0.0
    %471 = vmatprep.subr.mxu0 0.0
    %472 = vmatpush1.msra.mxu0 0.0
    %473 = vmatprep.subr.mxu0 0.0
    %474 = vmatpush1.msra.mxu0 0.0
    %475 = vmatprep.subr.mxu0 0.0
    %476 = vmatpush1.msra.mxu0 0.0
    %477 = vmatprep.subr.mxu0 0.0
    %478 = vmatpush1.msra.mxu0 0.0
    %479 = vmatprep.subr.mxu0 0.0
    %480 = vmatpush1.msra.mxu0 0.0
    %481 = vmatprep.subr.mxu0 0.0
    %482 = vmatpush1.msra.mxu0 0.0
    %483 = vmatprep.subr.mxu0 0.0
    %484 = vmatpush1.msra.mxu0 0.0
    %485 = vmatprep.subr.mxu0 0.0
    %486 = vmatpush1.msra.mxu0 0.0
    %487 = vmatprep.subr.mxu0 0.0
    %488 = vmatpush1.msra.mxu0 0.0
    %489 = vmatprep.subr.mxu0 0.0
    %490 = vmatpush1.msra.mxu0 0.0
    %491 = vmatprep.subr.mxu0 0.0
    %492 = vmatpush1.msra.mxu0 0.0
    %493 = vmatprep.subr.mxu0 0.0
    %494 = vmatpush1.msra.mxu0 0.0
    %495 = vmatprep.mubr.f32.mxu0 0.0
    %496 = vmatmul.mubr.f32.gmra.mrb[0].mxu0 %v429
    %v497 = vpop.f32.mrb[0].mxu0
    %v498 = vadd.f32 0.0, %v497
    %v499 = vpop.f32.mrb[0].mxu0
    %500 = vdwg.mxu0
    %501 = vrot.lane.b32.xlu0 %v152, 120
    %v502 = vpop.permute.xlu0 %501
    %503 = vrot.lane.b32.xlu0 %v152, 88
    %v504 = vpop.permute.xlu0 %503
    %v505 = vsel %vm167, %v502, 0
    %v507 = vsel %vm167, %v504, 0
    %509 = vmatprep.subr.mxu0 0.0
    %510 = vmatpush1.xpose.msra.mxu0 %v507
    %511 = vmatprep.subr.mxu0 0.0
    %512 = vmatpush1.xpose.msra.mxu0 0.0
    %513 = vmatprep.subr.mxu0 0.0
    %514 = vmatpush1.xpose.msra.mxu0 0.0
    %515 = vmatprep.subr.mxu0 0.0
    %516 = vmatpush1.xpose.msra.mxu0 0.0
    %517 = vmatprep.subr.mxu0 0.0
    %518 = vmatpush1.xpose.msra.mxu0 0.0
    %519 = vmatprep.subr.mxu0 0.0
    %520 = vmatpush1.xpose.msra.mxu0 0.0
    %521 = vmatprep.subr.mxu0 0.0
    %522 = vmatpush1.xpose.msra.mxu0 0.0
    %523 = vmatprep.subr.mxu0 0.0
    %524 = vmatpush1.xpose.msra.mxu0 0.0
    %525 = vmatprep.subr.mxu0 0.0
    %526 = vmatpush1.xpose.msra.mxu0 0.0
    %527 = vmatprep.subr.mxu0 0.0
    %528 = vmatpush1.xpose.msra.mxu0 0.0
    %529 = vmatprep.subr.mxu0 0.0
    %530 = vmatpush1.xpose.msra.mxu0 0.0
    %531 = vmatprep.subr.mxu0 0.0
    %532 = vmatpush1.xpose.msra.mxu0 0.0
    %533 = vmatprep.subr.mxu0 0.0
    %534 = vmatpush1.xpose.msra.mxu0 0.0
    %535 = vmatprep.subr.mxu0 0.0
    %536 = vmatpush1.xpose.msra.mxu0 0.0
    %537 = vmatprep.subr.mxu0 0.0
    %538 = vmatpush1.xpose.msra.mxu0 0.0
    %539 = vmatprep.subr.mxu0 0.0
    %540 = vmatpush1.xpose.msra.mxu0 0.0
    %541 = vmatprep.subr.mxu0 0.0
    %542 = vmatpush1.xpose.msra.mxu0 0.0
    %543 = vmatprep.subr.mxu0 0.0
    %544 = vmatpush1.xpose.msra.mxu0 0.0
    %545 = vmatprep.subr.mxu0 0.0
    %546 = vmatpush1.xpose.msra.mxu0 0.0
    %547 = vmatprep.subr.mxu0 0.0
    %548 = vmatpush1.xpose.msra.mxu0 0.0
    %549 = vmatprep.subr.mxu0 0.0
    %550 = vmatpush1.xpose.msra.mxu0 0.0
    %551 = vmatprep.subr.mxu0 0.0
    %552 = vmatpush1.xpose.msra.mxu0 0.0
    %553 = vmatprep.subr.mxu0 0.0
    %554 = vmatpush1.xpose.msra.mxu0 0.0
    %555 = vmatprep.subr.mxu0 0.0
    %556 = vmatpush1.xpose.msra.mxu0 0.0
    %557 = vmatprep.subr.mxu0 0.0
    %558 = vmatpush1.xpose.msra.mxu0 0.0
    %559 = vmatprep.subr.mxu0 0.0
    %560 = vmatpush1.xpose.msra.mxu0 0.0
    %561 = vmatprep.subr.mxu0 0.0
    %562 = vmatpush1.xpose.msra.mxu0 0.0
    %563 = vmatprep.subr.mxu0 0.0
    %564 = vmatpush1.xpose.msra.mxu0 0.0
    %565 = vmatprep.subr.mxu0 0.0
    %566 = vmatpush1.xpose.msra.mxu0 0.0
    %567 = vmatprep.subr.mxu0 0.0
    %568 = vmatpush1.xpose.msra.mxu0 0.0
    %569 = vmatprep.subr.mxu0 0.0
    %570 = vmatpush1.xpose.msra.mxu0 0.0
    %571 = vmatprep.subr.mxu0 0.0
    %572 = vmatpush1.xpose.msra.mxu0 0.0
    %573 = vmatprep.mubr.f32.mxu0 0.0
    %574 = vmatmul.mubr.f32.gmra.mrb[0].mxu0 %v505
    %v575 = vpop.f32.mrb[0].mxu0
    %v576 = vadd.f32 0.0, %v575
    %v577 = vpop.f32.mrb[0].mxu0
    %578 = vdwg.mxu0
    %579 = vrot.lane.b32.xlu0 %v157, 120
    %v580 = vpop.permute.xlu0 %579
    %581 = vrot.lane.b32.xlu0 %v157, 88
    %v582 = vpop.permute.xlu0 %581
    %v583 = vsel %vm167, %v580, 0
    %v585 = vsel %vm167, %v582, 0
    %587 = vmatprep.subr.mxu0 0.0
    %588 = vmatpush1.xpose.msra.mxu0 %v585
    %589 = vmatprep.subr.mxu0 0.0
    %590 = vmatpush1.xpose.msra.mxu0 0.0
    %591 = vmatprep.subr.mxu0 0.0
    %592 = vmatpush1.xpose.msra.mxu0 0.0
    %593 = vmatprep.subr.mxu0 0.0
    %594 = vmatpush1.xpose.msra.mxu0 0.0
    %595 = vmatprep.subr.mxu0 0.0
    %596 = vmatpush1.xpose.msra.mxu0 0.0
    %597 = vmatprep.subr.mxu0 0.0
    %598 = vmatpush1.xpose.msra.mxu0 0.0
    %599 = vmatprep.subr.mxu0 0.0
    %600 = vmatpush1.xpose.msra.mxu0 0.0
    %601 = vmatprep.subr.mxu0 0.0
    %602 = vmatpush1.xpose.msra.mxu0 0.0
    %603 = vmatprep.subr.mxu0 0.0
    %604 = vmatpush1.xpose.msra.mxu0 0.0
    %605 = vmatprep.subr.mxu0 0.0
    %606 = vmatpush1.xpose.msra.mxu0 0.0
    %607 = vmatprep.subr.mxu0 0.0
    %608 = vmatpush1.xpose.msra.mxu0 0.0
    %609 = vmatprep.subr.mxu0 0.0
    %610 = vmatpush1.xpose.msra.mxu0 0.0
    %611 = vmatprep.subr.mxu0 0.0
    %612 = vmatpush1.xpose.msra.mxu0 0.0
    %613 = vmatprep.subr.mxu0 0.0
    %614 = vmatpush1.xpose.msra.mxu0 0.0
    %615 = vmatprep.subr.mxu0 0.0
    %616 = vmatpush1.xpose.msra.mxu0 0.0
    %617 = vmatprep.subr.mxu0 0.0
    %618 = vmatpush1.xpose.msra.mxu0 0.0
    %619 = vmatprep.subr.mxu0 0.0
    %620 = vmatpush1.xpose.msra.mxu0 0.0
    %621 = vmatprep.subr.mxu0 0.0
    %622 = vmatpush1.xpose.msra.mxu0 0.0
    %623 = vmatprep.subr.mxu0 0.0
    %624 = vmatpush1.xpose.msra.mxu0 0.0
    %625 = vmatprep.subr.mxu0 0.0
    %626 = vmatpush1.xpose.msra.mxu0 0.0
    %627 = vmatprep.subr.mxu0 0.0
    %628 = vmatpush1.xpose.msra.mxu0 0.0
    %629 = vmatprep.subr.mxu0 0.0
    %630 = vmatpush1.xpose.msra.mxu0 0.0
    %631 = vmatprep.subr.mxu0 0.0
    %632 = vmatpush1.xpose.msra.mxu0 0.0
    %633 = vmatprep.subr.mxu0 0.0
    %634 = vmatpush1.xpose.msra.mxu0 0.0
    %635 = vmatprep.subr.mxu0 0.0
    %636 = vmatpush1.xpose.msra.mxu0 0.0
    %637 = vmatprep.subr.mxu0 0.0
    %638 = vmatpush1.xpose.msra.mxu0 0.0
    %639 = vmatprep.subr.mxu0 0.0
    %640 = vmatpush1.xpose.msra.mxu0 0.0
    %641 = vmatprep.subr.mxu0 0.0
    %642 = vmatpush1.xpose.msra.mxu0 0.0
    %643 = vmatprep.subr.mxu0 0.0
    %644 = vmatpush1.xpose.msra.mxu0 0.0
    %645 = vmatprep.subr.mxu0 0.0
    %646 = vmatpush1.xpose.msra.mxu0 0.0
    %647 = vmatprep.subr.mxu0 0.0
    %648 = vmatpush1.xpose.msra.mxu0 0.0
    %649 = vmatprep.subr.mxu0 0.0
    %650 = vmatpush1.xpose.msra.mxu0 0.0
    %651 = vmatprep.mubr.f32.mxu0 0.0
    %652 = vmatmul.mubr.f32.gmra.mrb[0].mxu0 %v583
    %v653 = vpop.f32.mrb[0].mxu0
    %v654 = vadd.f32 0.0, %v653
    %v655 = vpop.f32.mrb[0].mxu0
    %656 = vdwg.mxu0
    %v657 = vsel %vm167, %v576, -inf
    %658 = vmax.xlane.f32.xlu0 %v657
    %v659 = vpop.xlane.xlu0 %658
    %v660 = vsel %vm167, %v654, -inf
    %661 = vmax.xlane.f32.xlu0 %v660
    %v662 = vpop.xlane.xlu0 %661
    %v663 = vsub.f32 %v576, %v659
    %v664 = vsub.f32 %v654, %v662
    %v665 = vmul.f32 %v663, 1.442695
    %v666 = vpow.pop %v665
    %v667 = vmul.f32 %v664, 1.442695
    %v668 = vpow.pop %v667
    %v669 = vsel %vm167, %v666, 0.0
    %670 = vadd.xlane.f32.xlu0 %v669
    %v671 = vpop.xlane.xlu0 %670
    %v672 = vsel %vm167, %v668, 0.0
    %673 = vadd.xlane.f32.xlu0 %v672
    %v674 = vpop.xlane.xlu0 %673
    %v675 = vrcp.pop %v671
    %v676 = vrcp.pop %v674
    %v677 = vmul.f32 %v671, %v675
    %v678 = vmul.f32 %v674, %v676
    %v679 = vsub.f32 2.0, %v677
    %v680 = vsub.f32 2.0, %v678
    %v681 = vmul.f32 %v675, %v679
    %v682 = vmul.f32 %v676, %v680
    %v683 = vmul.f32 %v666, %v681
    %v684 = vmul.f32 %v668, %v682
    %v685 = vadd.f32 %v347, %v683
    %v686 = vadd.f32 %v348, %v684
    %687 = vrot.lane.b32.xlu0 %v152, 56
    %v688 = vpop.permute.xlu0 %687
    %v691 = vsel %vm167, %v683, 0
    %693 = vmatprep.subr.mxu0 0.0
    %694 = vmatpush1.msra.mxu0 %v688
    %695 = vmatprep.subr.mxu0 0.0
    %696 = vmatpush1.msra.mxu0 0.0
    %697 = vmatprep.subr.mxu0 0.0
    %698 = vmatpush1.msra.mxu0 0.0
    %699 = vmatprep.subr.mxu0 0.0
    %700 = vmatpush1.msra.mxu0 0.0
    %701 = vmatprep.subr.mxu0 0.0
    %702 = vmatpush1.msra.mxu0 0.0
    %703 = vmatprep.subr.mxu0 0.0
    %704 = vmatpush1.msra.mxu0 0.0
    %705 = vmatprep.subr.mxu0 0.0
    %706 = vmatpush1.msra.mxu0 0.0
    %707 = vmatprep.subr.mxu0 0.0
    %708 = vmatpush1.msra.mxu0 0.0
    %709 = vmatprep.subr.mxu0 0.0
    %710 = vmatpush1.msra.mxu0 0.0
    %711 = vmatprep.subr.mxu0 0.0
    %712 = vmatpush1.msra.mxu0 0.0
    %713 = vmatprep.subr.mxu0 0.0
    %714 = vmatpush1.msra.mxu0 0.0
    %715 = vmatprep.subr.mxu0 0.0
    %716 = vmatpush1.msra.mxu0 0.0
    %717 = vmatprep.subr.mxu0 0.0
    %718 = vmatpush1.msra.mxu0 0.0
    %719 = vmatprep.subr.mxu0 0.0
    %720 = vmatpush1.msra.mxu0 0.0
    %721 = vmatprep.subr.mxu0 0.0
    %722 = vmatpush1.msra.mxu0 0.0
    %723 = vmatprep.subr.mxu0 0.0
    %724 = vmatpush1.msra.mxu0 0.0
    %725 = vmatprep.subr.mxu0 0.0
    %726 = vmatpush1.msra.mxu0 0.0
    %727 = vmatprep.subr.mxu0 0.0
    %728 = vmatpush1.msra.mxu0 0.0
    %729 = vmatprep.subr.mxu0 0.0
    %730 = vmatpush1.msra.mxu0 0.0
    %731 = vmatprep.subr.mxu0 0.0
    %732 = vmatpush1.msra.mxu0 0.0
    %733 = vmatprep.subr.mxu0 0.0
    %734 = vmatpush1.msra.mxu0 0.0
    %735 = vmatprep.subr.mxu0 0.0
    %736 = vmatpush1.msra.mxu0 0.0
    %737 = vmatprep.subr.mxu0 0.0
    %738 = vmatpush1.msra.mxu0 0.0
    %739 = vmatprep.subr.mxu0 0.0
    %740 = vmatpush1.msra.mxu0 0.0
    %741 = vmatprep.subr.mxu0 0.0
    %742 = vmatpush1.msra.mxu0 0.0
    %743 = vmatprep.subr.mxu0 0.0
    %744 = vmatpush1.msra.mxu0 0.0
    %745 = vmatprep.subr.mxu0 0.0
    %746 = vmatpush1.msra.mxu0 0.0
    %747 = vmatprep.subr.mxu0 0.0
    %748 = vmatpush1.msra.mxu0 0.0
    %749 = vmatprep.subr.mxu0 0.0
    %750 = vmatpush1.msra.mxu0 0.0
    %751 = vmatprep.subr.mxu0 0.0
    %752 = vmatpush1.msra.mxu0 0.0
    %753 = vmatprep.subr.mxu0 0.0
    %754 = vmatpush1.msra.mxu0 0.0
    %755 = vmatprep.subr.mxu0 0.0
    %756 = vmatpush1.msra.mxu0 0.0
    %757 = vmatprep.mubr.f32.mxu0 0.0
    %758 = vmatmul.mubr.f32.gmra.mrb[0].mxu0 %v691
    %v759 = vpop.f32.mrb[0].mxu0
    %v760 = vadd.f32 0.0, %v759
    %v761 = vpop.f32.mrb[0].mxu0
    %762 = vdwg.mxu0
    %763 = vrot.lane.b32.xlu0 %v157, 56
    %v764 = vpop.permute.xlu0 %763
    %v767 = vsel %vm167, %v684, 0
    %769 = vmatprep.subr.mxu0 0.0
    %770 = vmatpush1.msra.mxu0 %v764
    %771 = vmatprep.subr.mxu0 0.0
    %772 = vmatpush1.msra.mxu0 0.0
    %773 = vmatprep.subr.mxu0 0.0
    %774 = vmatpush1.msra.mxu0 0.0
    %775 = vmatprep.subr.mxu0 0.0
    %776 = vmatpush1.msra.mxu0 0.0
    %777 = vmatprep.subr.mxu0 0.0
    %778 = vmatpush1.msra.mxu0 0.0
    %779 = vmatprep.subr.mxu0 0.0
    %780 = vmatpush1.msra.mxu0 0.0
    %781 = vmatprep.subr.mxu0 0.0
    %782 = vmatpush1.msra.mxu0 0.0
    %783 = vmatprep.subr.mxu0 0.0
    %784 = vmatpush1.msra.mxu0 0.0
    %785 = vmatprep.subr.mxu0 0.0
    %786 = vmatpush1.msra.mxu0 0.0
    %787 = vmatprep.subr.mxu0 0.0
    %788 = vmatpush1.msra.mxu0 0.0
    %789 = vmatprep.subr.mxu0 0.0
    %790 = vmatpush1.msra.mxu0 0.0
    %791 = vmatprep.subr.mxu0 0.0
    %792 = vmatpush1.msra.mxu0 0.0
    %793 = vmatprep.subr.mxu0 0.0
    %794 = vmatpush1.msra.mxu0 0.0
    %795 = vmatprep.subr.mxu0 0.0
    %796 = vmatpush1.msra.mxu0 0.0
    %797 = vmatprep.subr.mxu0 0.0
    %798 = vmatpush1.msra.mxu0 0.0
    %799 = vmatprep.subr.mxu0 0.0
    %800 = vmatpush1.msra.mxu0 0.0
    %801 = vmatprep.subr.mxu0 0.0
    %802 = vmatpush1.msra.mxu0 0.0
    %803 = vmatprep.subr.mxu0 0.0
    %804 = vmatpush1.msra.mxu0 0.0
    %805 = vmatprep.subr.mxu0 0.0
    %806 = vmatpush1.msra.mxu0 0.0
    %807 = vmatprep.subr.mxu0 0.0
    %808 = vmatpush1.msra.mxu0 0.0
    %809 = vmatprep.subr.mxu0 0.0
    %810 = vmatpush1.msra.mxu0 0.0
    %811 = vmatprep.subr.mxu0 0.0
    %812 = vmatpush1.msra.mxu0 0.0
    %813 = vmatprep.subr.mxu0 0.0
    %814 = vmatpush1.msra.mxu0 0.0
    %815 = vmatprep.subr.mxu0 0.0
    %816 = vmatpush1.msra.mxu0 0.0
    %817 = vmatprep.subr.mxu0 0.0
    %818 = vmatpush1.msra.mxu0 0.0
    %819 = vmatprep.subr.mxu0 0.0
    %820 = vmatpush1.msra.mxu0 0.0
    %821 = vmatprep.subr.mxu0 0.0
    %822 = vmatpush1.msra.mxu0 0.0
    %823 = vmatprep.subr.mxu0 0.0
    %824 = vmatpush1.msra.mxu0 0.0
    %825 = vmatprep.subr.mxu0 0.0
    %826 = vmatpush1.msra.mxu0 0.0
    %827 = vmatprep.subr.mxu0 0.0
    %828 = vmatpush1.msra.mxu0 0.0
    %829 = vmatprep.subr.mxu0 0.0
    %830 = vmatpush1.msra.mxu0 0.0
    %831 = vmatprep.subr.mxu0 0.0
    %832 = vmatpush1.msra.mxu0 0.0
    %833 = vmatprep.mubr.f32.mxu0 0.0
    %834 = vmatmul.mubr.f32.gmra.mrb[0].mxu0 %v767
    %v835 = vpop.f32.mrb[0].mxu0
    %v836 = vadd.f32 0.0, %v835
    %v837 = vpop.f32.mrb[0].mxu0
    %838 = vdwg.mxu0
    %v840 = vsel %vm167, %v760, 0
    %v843 = vsel %vm167, %v836, 0
    %845 = vmatprep.subr.mxu0 0.0
    %846 = vmatpush1.msra.mxu0 %v161
    %847 = vmatprep.subr.mxu0 0.0
    %848 = vmatpush1.msra.mxu0 0.0
    %849 = vmatprep.subr.mxu0 0.0
    %850 = vmatpush1.msra.mxu0 0.0
    %851 = vmatprep.subr.mxu0 0.0
    %852 = vmatpush1.msra.mxu0 0.0
    %853 = vmatprep.subr.mxu0 0.0
    %854 = vmatpush1.msra.mxu0 0.0
    %855 = vmatprep.subr.mxu0 0.0
    %856 = vmatpush1.msra.mxu0 0.0
    %857 = vmatprep.subr.mxu0 0.0
    %858 = vmatpush1.msra.mxu0 0.0
    %859 = vmatprep.subr.mxu0 0.0
    %860 = vmatpush1.msra.mxu0 0.0
    %861 = vmatprep.subr.mxu0 0.0
    %862 = vmatpush1.msra.mxu0 0.0
    %863 = vmatprep.subr.mxu0 0.0
    %864 = vmatpush1.msra.mxu0 0.0
    %865 = vmatprep.subr.mxu0 0.0
    %866 = vmatpush1.msra.mxu0 0.0
    %867 = vmatprep.subr.mxu0 0.0
    %868 = vmatpush1.msra.mxu0 0.0
    %869 = vmatprep.subr.mxu0 0.0
    %870 = vmatpush1.msra.mxu0 0.0
    %871 = vmatprep.subr.mxu0 0.0
    %872 = vmatpush1.msra.mxu0 0.0
    %873 = vmatprep.subr.mxu0 0.0
    %874 = vmatpush1.msra.mxu0 0.0
    %875 = vmatprep.subr.mxu0 0.0
    %876 = vmatpush1.msra.mxu0 0.0
    %877 = vmatprep.subr.mxu0 0.0
    %878 = vmatpush1.msra.mxu0 0.0
    %879 = vmatprep.subr.mxu0 0.0
    %880 = vmatpush1.msra.mxu0 0.0
    %881 = vmatprep.subr.mxu0 0.0
    %882 = vmatpush1.msra.mxu0 0.0
    %883 = vmatprep.subr.mxu0 0.0
    %884 = vmatpush1.msra.mxu0 0.0
    %885 = vmatprep.subr.mxu0 0.0
    %886 = vmatpush1.msra.mxu0 0.0
    %887 = vmatprep.subr.mxu0 0.0
    %888 = vmatpush1.msra.mxu0 0.0
    %889 = vmatprep.subr.mxu0 0.0
    %890 = vmatpush1.msra.mxu0 0.0
    %891 = vmatprep.subr.mxu0 0.0
    %892 = vmatpush1.msra.mxu0 0.0
    %893 = vmatprep.subr.mxu0 0.0
    %894 = vmatpush1.msra.mxu0 0.0
    %895 = vmatprep.subr.mxu0 0.0
    %896 = vmatpush1.msra.mxu0 0.0
    %897 = vmatprep.subr.mxu0 0.0
    %898 = vmatpush1.msra.mxu0 0.0
    %899 = vmatprep.subr.mxu0 0.0
    %900 = vmatpush1.msra.mxu0 0.0
    %901 = vmatprep.subr.mxu0 0.0
    %902 = vmatpush1.msra.mxu0 0.0
    %903 = vmatprep.subr.mxu0 0.0
    %904 = vmatpush1.msra.mxu0 0.0
    %905 = vmatprep.subr.mxu0 0.0
    %906 = vmatpush1.msra.mxu0 0.0
    %907 = vmatprep.subr.mxu0 0.0
    %908 = vmatpush1.msra.mxu0 0.0
    %909 = vmatprep.mubr.f32.mxu0 0.0
    %910 = vmatmul.mubr.f32.gmra.mrb[0].mxu0 %v840
    %v911 = vpop.f32.mrb[0].mxu0
    %v912 = vadd.f32 0.0, %v911
    %v913 = vpop.f32.mrb[0].mxu0
    %914 = vmatprep.mubr.f32.mxu0 0.0
    %915 = vmatmul.mubr.f32.gmra.mrb[0].mxu0 %v843
    %v916 = vpop.f32.mrb[0].mxu0
    %v917 = vadd.f32 0.0, %v916
    %v918 = vpop.f32.mrb[0].mxu0
    %919 = vdwg.mxu0
    %v921 = vsel %vm167, %v422, 0
    %v924 = vsel %vm167, %v498, 0
    %926 = vmatprep.subr.mxu0 0.0
    %927 = vmatpush1.msra.mxu0 %v160
    %928 = vmatprep.subr.mxu0 0.0
    %929 = vmatpush1.msra.mxu0 0.0
    %930 = vmatprep.subr.mxu0 0.0
    %931 = vmatpush1.msra.mxu0 0.0
    %932 = vmatprep.subr.mxu0 0.0
    %933 = vmatpush1.msra.mxu0 0.0
    %934 = vmatprep.subr.mxu0 0.0
    %935 = vmatpush1.msra.mxu0 0.0
    %936 = vmatprep.subr.mxu0 0.0
    %937 = vmatpush1.msra.mxu0 0.0
    %938 = vmatprep.subr.mxu0 0.0
    %939 = vmatpush1.msra.mxu0 0.0
    %940 = vmatprep.subr.mxu0 0.0
    %941 = vmatpush1.msra.mxu0 0.0
    %942 = vmatprep.subr.mxu0 0.0
    %943 = vmatpush1.msra.mxu0 0.0
    %944 = vmatprep.subr.mxu0 0.0
    %945 = vmatpush1.msra.mxu0 0.0
    %946 = vmatprep.subr.mxu0 0.0
    %947 = vmatpush1.msra.mxu0 0.0
    %948 = vmatprep.subr.mxu0 0.0
    %949 = vmatpush1.msra.mxu0 0.0
    %950 = vmatprep.subr.mxu0 0.0
    %951 = vmatpush1.msra.mxu0 0.0
    %952 = vmatprep.subr.mxu0 0.0
    %953 = vmatpush1.msra.mxu0 0.0
    %954 = vmatprep.subr.mxu0 0.0
    %955 = vmatpush1.msra.mxu0 0.0
    %956 = vmatprep.subr.mxu0 0.0
    %957 = vmatpush1.msra.mxu0 0.0
    %958 = vmatprep.subr.mxu0 0.0
    %959 = vmatpush1.msra.mxu0 0.0
    %960 = vmatprep.subr.mxu0 0.0
    %961 = vmatpush1.msra.mxu0 0.0
    %962 = vmatprep.subr.mxu0 0.0
    %963 = vmatpush1.msra.mxu0 0.0
    %964 = vmatprep.subr.mxu0 0.0
    %965 = vmatpush1.msra.mxu0 0.0
    %966 = vmatprep.subr.mxu0 0.0
    %967 = vmatpush1.msra.mxu0 0.0
    %968 = vmatprep.subr.mxu0 0.0
    %969 = vmatpush1.msra.mxu0 0.0
    %970 = vmatprep.subr.mxu0 0.0
    %971 = vmatpush1.msra.mxu0 0.0
    %972 = vmatprep.subr.mxu0 0.0
    %973 = vmatpush1.msra.mxu0 0.0
    %974 = vmatprep.subr.mxu0 0.0
    %975 = vmatpush1.msra.mxu0 0.0
    %976 = vmatprep.subr.mxu0 0.0
    %977 = vmatpush1.msra.mxu0 0.0
    %978 = vmatprep.subr.mxu0 0.0
    %979 = vmatpush1.msra.mxu0 0.0
    %980 = vmatprep.subr.mxu0 0.0
    %981 = vmatpush1.msra.mxu0 0.0
    %982 = vmatprep.subr.mxu0 0.0
    %983 = vmatpush1.msra.mxu0 0.0
    %984 = vmatprep.subr.mxu0 0.0
    %985 = vmatpush1.msra.mxu0 0.0
    %986 = vmatprep.subr.mxu0 0.0
    %987 = vmatpush1.msra.mxu0 0.0
    %988 = vmatprep.subr.mxu0 0.0
    %989 = vmatpush1.msra.mxu0 0.0
    %990 = vmatprep.mubr.f32.mxu0 0.0
    %991 = vmatmul.mubr.f32.gmra.mrb[0].mxu0 %v921
    %v992 = vpop.f32.mrb[0].mxu0
    %v993 = vadd.f32 %v912, %v992
    %v994 = vpop.f32.mrb[0].mxu0
    %995 = vmatprep.mubr.f32.mxu0 0.0
    %996 = vmatmul.mubr.f32.gmra.mrb[0].mxu0 %v924
    %v997 = vpop.f32.mrb[0].mxu0
    %v998 = vadd.f32 %v917, %v997
    %v999 = vpop.f32.mrb[0].mxu0
    %1000 = vdwg.mxu0
    %1001 = vrot.lane.b32.xlu0 %v152, 112
    %v1002 = vpop.permute.xlu0 %1001
    %1003 = vrot.lane.b32.xlu0 %v152, 80
    %v1004 = vpop.permute.xlu0 %1003
    %v1005 = vsel %vm167, %v1002, 0
    %v1007 = vsel %vm167, %v1004, 0
    %1009 = vmatprep.subr.mxu0 0.0
    %1010 = vmatpush1.xpose.msra.mxu0 %v1007
    %1011 = vmatprep.subr.mxu0 0.0
    %1012 = vmatpush1.xpose.msra.mxu0 0.0
    %1013 = vmatprep.subr.mxu0 0.0
    %1014 = vmatpush1.xpose.msra.mxu0 0.0
    %1015 = vmatprep.subr.mxu0 0.0
    %1016 = vmatpush1.xpose.msra.mxu0 0.0
    %1017 = vmatprep.subr.mxu0 0.0
    %1018 = vmatpush1.xpose.msra.mxu0 0.0
    %1019 = vmatprep.subr.mxu0 0.0
    %1020 = vmatpush1.xpose.msra.mxu0 0.0
    %1021 = vmatprep.subr.mxu0 0.0
    %1022 = vmatpush1.xpose.msra.mxu0 0.0
    %1023 = vmatprep.subr.mxu0 0.0
    %1024 = vmatpush1.xpose.msra.mxu0 0.0
    %1025 = vmatprep.subr.mxu0 0.0
    %1026 = vmatpush1.xpose.msra.mxu0 0.0
    %1027 = vmatprep.subr.mxu0 0.0
    %1028 = vmatpush1.xpose.msra.mxu0 0.0
    %1029 = vmatprep.subr.mxu0 0.0
    %1030 = vmatpush1.xpose.msra.mxu0 0.0
    %1031 = vmatprep.subr.mxu0 0.0
    %1032 = vmatpush1.xpose.msra.mxu0 0.0
    %1033 = vmatprep.subr.mxu0 0.0
    %1034 = vmatpush1.xpose.msra.mxu0 0.0
    %1035 = vmatprep.subr.mxu0 0.0
    %1036 = vmatpush1.xpose.msra.mxu0 0.0
    %1037 = vmatprep.subr.mxu0 0.0
    %1038 = vmatpush1.xpose.msra.mxu0 0.0
    %1039 = vmatprep.subr.mxu0 0.0
    %1040 = vmatpush1.xpose.msra.mxu0 0.0
    %1041 = vmatprep.subr.mxu0 0.0
    %1042 = vmatpush1.xpose.msra.mxu0 0.0
    %1043 = vmatprep.subr.mxu0 0.0
    %1044 = vmatpush1.xpose.msra.mxu0 0.0
    %1045 = vmatprep.subr.mxu0 0.0
    %1046 = vmatpush1.xpose.msra.mxu0 0.0
    %1047 = vmatprep.subr.mxu0 0.0
    %1048 = vmatpush1.xpose.msra.mxu0 0.0
    %1049 = vmatprep.subr.mxu0 0.0
    %1050 = vmatpush1.xpose.msra.mxu0 0.0
    %1051 = vmatprep.subr.mxu0 0.0
    %1052 = vmatpush1.xpose.msra.mxu0 0.0
    %1053 = vmatprep.subr.mxu0 0.0
    %1054 = vmatpush1.xpose.msra.mxu0 0.0
    %1055 = vmatprep.subr.mxu0 0.0
    %1056 = vmatpush1.xpose.msra.mxu0 0.0
    %1057 = vmatprep.subr.mxu0 0.0
    %1058 = vmatpush1.xpose.msra.mxu0 0.0
    %1059 = vmatprep.subr.mxu0 0.0
    %1060 = vmatpush1.xpose.msra.mxu0 0.0
    %1061 = vmatprep.subr.mxu0 0.0
    %1062 = vmatpush1.xpose.msra.mxu0 0.0
    %1063 = vmatprep.subr.mxu0 0.0
    %1064 = vmatpush1.xpose.msra.mxu0 0.0
    %1065 = vmatprep.subr.mxu0 0.0
    %1066 = vmatpush1.xpose.msra.mxu0 0.0
    %1067 = vmatprep.subr.mxu0 0.0
    %1068 = vmatpush1.xpose.msra.mxu0 0.0
    %1069 = vmatprep.subr.mxu0 0.0
    %1070 = vmatpush1.xpose.msra.mxu0 0.0
    %1071 = vmatprep.subr.mxu0 0.0
    %1072 = vmatpush1.xpose.msra.mxu0 0.0
    %1073 = vmatprep.mubr.f32.mxu0 0.0
    %1074 = vmatmul.mubr.f32.gmra.mrb[0].mxu0 %v1005
    %v1075 = vpop.f32.mrb[0].mxu0
    %v1076 = vadd.f32 0.0, %v1075
    %v1077 = vpop.f32.mrb[0].mxu0
    %1078 = vdwg.mxu0
    %1079 = vrot.lane.b32.xlu0 %v157, 112
    %v1080 = vpop.permute.xlu0 %1079
    %1081 = vrot.lane.b32.xlu0 %v157, 80
    %v1082 = vpop.permute.xlu0 %1081
    %v1083 = vsel %vm167, %v1080, 0
    %v1085 = vsel %vm167, %v1082, 0
    %1087 = vmatprep.subr.mxu0 0.0
    %1088 = vmatpush1.xpose.msra.mxu0 %v1085
    %1089 = vmatprep.subr.mxu0 0.0
    %1090 = vmatpush1.xpose.msra.mxu0 0.0
    %1091 = vmatprep.subr.mxu0 0.0
    %1092 = vmatpush1.xpose.msra.mxu0 0.0
    %1093 = vmatprep.subr.mxu0 0.0
    %1094 = vmatpush1.xpose.msra.mxu0 0.0
    %1095 = vmatprep.subr.mxu0 0.0
    %1096 = vmatpush1.xpose.msra.mxu0 0.0
    %1097 = vmatprep.subr.mxu0 0.0
    %1098 = vmatpush1.xpose.msra.mxu0 0.0
    %1099 = vmatprep.subr.mxu0 0.0
    %1100 = vmatpush1.xpose.msra.mxu0 0.0
    %1101 = vmatprep.subr.mxu0 0.0
    %1102 = vmatpush1.xpose.msra.mxu0 0.0
    %1103 = vmatprep.subr.mxu0 0.0
    %1104 = vmatpush1.xpose.msra.mxu0 0.0
    %1105 = vmatprep.subr.mxu0 0.0
    %1106 = vmatpush1.xpose.msra.mxu0 0.0
    %1107 = vmatprep.subr.mxu0 0.0
    %1108 = vmatpush1.xpose.msra.mxu0 0.0
    %1109 = vmatprep.subr.mxu0 0.0
    %1110 = vmatpush1.xpose.msra.mxu0 0.0
    %1111 = vmatprep.subr.mxu0 0.0
    %1112 = vmatpush1.xpose.msra.mxu0 0.0
    %1113 = vmatprep.subr.mxu0 0.0
    %1114 = vmatpush1.xpose.msra.mxu0 0.0
    %1115 = vmatprep.subr.mxu0 0.0
    %1116 = vmatpush1.xpose.msra.mxu0 0.0
    %1117 = vmatprep.subr.mxu0 0.0
    %1118 = vmatpush1.xpose.msra.mxu0 0.0
    %1119 = vmatprep.subr.mxu0 0.0
    %1120 = vmatpush1.xpose.msra.mxu0 0.0
    %1121 = vmatprep.subr.mxu0 0.0
    %1122 = vmatpush1.xpose.msra.mxu0 0.0
    %1123 = vmatprep.subr.mxu0 0.0
    %1124 = vmatpush1.xpose.msra.mxu0 0.0
    %1125 = vmatprep.subr.mxu0 0.0
    %1126 = vmatpush1.xpose.msra.mxu0 0.0
    %1127 = vmatprep.subr.mxu0 0.0
    %1128 = vmatpush1.xpose.msra.mxu0 0.0
    %1129 = vmatprep.subr.mxu0 0.0
    %1130 = vmatpush1.xpose.msra.mxu0 0.0
    %1131 = vmatprep.subr.mxu0 0.0
    %1132 = vmatpush1.xpose.msra.mxu0 0.0
    %1133 = vmatprep.subr.mxu0 0.0
    %1134 = vmatpush1.xpose.msra.mxu0 0.0
    %1135 = vmatprep.subr.mxu0 0.0
    %1136 = vmatpush1.xpose.msra.mxu0 0.0
    %1137 = vmatprep.subr.mxu0 0.0
    %1138 = vmatpush1.xpose.msra.mxu0 0.0
    %1139 = vmatprep.subr.mxu0 0.0
    %1140 = vmatpush1.xpose.msra.mxu0 0.0
    %1141 = vmatprep.subr.mxu0 0.0
    %1142 = vmatpush1.xpose.msra.mxu0 0.0
    %1143 = vmatprep.subr.mxu0 0.0
    %1144 = vmatpush1.xpose.msra.mxu0 0.0
    %1145 = vmatprep.subr.mxu0 0.0
    %1146 = vmatpush1.xpose.msra.mxu0 0.0
    %1147 = vmatprep.subr.mxu0 0.0
    %1148 = vmatpush1.xpose.msra.mxu0 0.0
    %1149 = vmatprep.subr.mxu0 0.0
    %1150 = vmatpush1.xpose.msra.mxu0 0.0
    %1151 = vmatprep.mubr.f32.mxu0 0.0
    %1152 = vmatmul.mubr.f32.gmra.mrb[0].mxu0 %v1083
    %v1153 = vpop.f32.mrb[0].mxu0
    %v1154 = vadd.f32 0.0, %v1153
    %v1155 = vpop.f32.mrb[0].mxu0
    %1156 = vdwg.mxu0
    %v1157 = vsel %vm167, %v1076, -inf
    %1158 = vmax.xlane.f32.xlu0 %v1157
    %v1159 = vpop.xlane.xlu0 %1158
    %v1160 = vsel %vm167, %v1154, -inf
    %1161 = vmax.xlane.f32.xlu0 %v1160
    %v1162 = vpop.xlane.xlu0 %1161
    %v1163 = vsub.f32 %v1076, %v1159
    %v1164 = vsub.f32 %v1154, %v1162
    %v1165 = vmul.f32 %v1163, 1.442695
    %v1166 = vpow.pop %v1165
    %v1167 = vmul.f32 %v1164, 1.442695
    %v1168 = vpow.pop %v1167
    %v1169 = vsel %vm167, %v1166, 0.0
    %1170 = vadd.xlane.f32.xlu0 %v1169
    %v1171 = vpop.xlane.xlu0 %1170
    %v1172 = vsel %vm167, %v1168, 0.0
    %1173 = vadd.xlane.f32.xlu0 %v1172
    %v1174 = vpop.xlane.xlu0 %1173
    %v1175 = vrcp.pop %v1171
    %v1176 = vrcp.pop %v1174
    %v1177 = vmul.f32 %v1171, %v1175
    %v1178 = vmul.f32 %v1174, %v1176
    %v1179 = vsub.f32 2.0, %v1177
    %v1180 = vsub.f32 2.0, %v1178
    %v1181 = vmul.f32 %v1175, %v1179
    %v1182 = vmul.f32 %v1176, %v1180
    %v1183 = vmul.f32 %v1166, %v1181
    %v1184 = vmul.f32 %v1168, %v1182
    %v1185 = vadd.f32 %v685, %v1183
    %v1186 = vadd.f32 %v686, %v1184
    %1187 = vrot.lane.b32.xlu0 %v152, 48
    %v1188 = vpop.permute.xlu0 %1187
    %v1191 = vsel %vm167, %v1183, 0
    %1193 = vmatprep.subr.mxu0 0.0
    %1194 = vmatpush1.msra.mxu0 %v1188
    %1195 = vmatprep.subr.mxu0 0.0
    %1196 = vmatpush1.msra.mxu0 0.0
    %1197 = vmatprep.subr.mxu0 0.0
    %1198 = vmatpush1.msra.mxu0 0.0
    %1199 = vmatprep.subr.mxu0 0.0
    %1200 = vmatpush1.msra.mxu0 0.0
    %1201 = vmatprep.subr.mxu0 0.0
    %1202 = vmatpush1.msra.mxu0 0.0
    %1203 = vmatprep.subr.mxu0 0.0
    %1204 = vmatpush1.msra.mxu0 0.0
    %1205 = vmatprep.subr.mxu0 0.0
    %1206 = vmatpush1.msra.mxu0 0.0
    %1207 = vmatprep.subr.mxu0 0.0
    %1208 = vmatpush1.msra.mxu0 0.0
    %1209 = vmatprep.subr.mxu0 0.0
    %1210 = vmatpush1.msra.mxu0 0.0
    %1211 = vmatprep.subr.mxu0 0.0
    %1212 = vmatpush1.msra.mxu0 0.0
    %1213 = vmatprep.subr.mxu0 0.0
    %1214 = vmatpush1.msra.mxu0 0.0
    %1215 = vmatprep.subr.mxu0 0.0
    %1216 = vmatpush1.msra.mxu0 0.0
    %1217 = vmatprep.subr.mxu0 0.0
    %1218 = vmatpush1.msra.mxu0 0.0
    %1219 = vmatprep.subr.mxu0 0.0
    %1220 = vmatpush1.msra.mxu0 0.0
    %1221 = vmatprep.subr.mxu0 0.0
    %1222 = vmatpush1.msra.mxu0 0.0
    %1223 = vmatprep.subr.mxu0 0.0
    %1224 = vmatpush1.msra.mxu0 0.0
    %1225 = vmatprep.subr.mxu0 0.0
    %1226 = vmatpush1.msra.mxu0 0.0
    %1227 = vmatprep.subr.mxu0 0.0
    %1228 = vmatpush1.msra.mxu0 0.0
    %1229 = vmatprep.subr.mxu0 0.0
    %1230 = vmatpush1.msra.mxu0 0.0
    %1231 = vmatprep.subr.mxu0 0.0
    %1232 = vmatpush1.msra.mxu0 0.0
    %1233 = vmatprep.subr.mxu0 0.0
    %1234 = vmatpush1.msra.mxu0 0.0
    %1235 = vmatprep.subr.mxu0 0.0
    %1236 = vmatpush1.msra.mxu0 0.0
    %1237 = vmatprep.subr.mxu0 0.0
    %1238 = vmatpush1.msra.mxu0 0.0
    %1239 = vmatprep.subr.mxu0 0.0
    %1240 = vmatpush1.msra.mxu0 0.0
    %1241 = vmatprep.subr.mxu0 0.0
    %1242 = vmatpush1.msra.mxu0 0.0
    %1243 = vmatprep.subr.mxu0 0.0
    %1244 = vmatpush1.msra.mxu0 0.0
    %1245 = vmatprep.subr.mxu0 0.0
    %1246 = vmatpush1.msra.mxu0 0.0
    %1247 = vmatprep.subr.mxu0 0.0
    %1248 = vmatpush1.msra.mxu0 0.0
    %1249 = vmatprep.subr.mxu0 0.0
    %1250 = vmatpush1.msra.mxu0 0.0
    %1251 = vmatprep.subr.mxu0 0.0
    %1252 = vmatpush1.msra.mxu0 0.0
    %1253 = vmatprep.subr.mxu0 0.0
    %1254 = vmatpush1.msra.mxu0 0.0
    %1255 = vmatprep.subr.mxu0 0.0
    %1256 = vmatpush1.msra.mxu0 0.0
    %1257 = vmatprep.mubr.f32.mxu0 0.0
    %1258 = vmatmul.mubr.f32.gmra.mrb[0].mxu0 %v1191
    %v1259 = vpop.f32.mrb[0].mxu0
    %v1260 = vadd.f32 0.0, %v1259
    %v1261 = vpop.f32.mrb[0].mxu0
    %1262 = vdwg.mxu0
    %1263 = vrot.lane.b32.xlu0 %v157, 48
    %v1264 = vpop.permute.xlu0 %1263
    %v1267 = vsel %vm167, %v1184, 0
    %1269 = vmatprep.subr.mxu0 0.0
    %1270 = vmatpush1.msra.mxu0 %v1264
    %1271 = vmatprep.subr.mxu0 0.0
    %1272 = vmatpush1.msra.mxu0 0.0
    %1273 = vmatprep.subr.mxu0 0.0
    %1274 = vmatpush1.msra.mxu0 0.0
    %1275 = vmatprep.subr.mxu0 0.0
    %1276 = vmatpush1.msra.mxu0 0.0
    %1277 = vmatprep.subr.mxu0 0.0
    %1278 = vmatpush1.msra.mxu0 0.0
    %1279 = vmatprep.subr.mxu0 0.0
    %1280 = vmatpush1.msra.mxu0 0.0
    %1281 = vmatprep.subr.mxu0 0.0
    %1282 = vmatpush1.msra.mxu0 0.0
    %1283 = vmatprep.subr.mxu0 0.0
    %1284 = vmatpush1.msra.mxu0 0.0
    %1285 = vmatprep.subr.mxu0 0.0
    %1286 = vmatpush1.msra.mxu0 0.0
    %1287 = vmatprep.subr.mxu0 0.0
    %1288 = vmatpush1.msra.mxu0 0.0
    %1289 = vmatprep.subr.mxu0 0.0
    %1290 = vmatpush1.msra.mxu0 0.0
    %1291 = vmatprep.subr.mxu0 0.0
    %1292 = vmatpush1.msra.mxu0 0.0
    %1293 = vmatprep.subr.mxu0 0.0
    %1294 = vmatpush1.msra.mxu0 0.0
    %1295 = vmatprep.subr.mxu0 0.0
    %1296 = vmatpush1.msra.mxu0 0.0
    %1297 = vmatprep.subr.mxu0 0.0
    %1298 = vmatpush1.msra.mxu0 0.0
    %1299 = vmatprep.subr.mxu0 0.0
    %1300 = vmatpush1.msra.mxu0 0.0
    %1301 = vmatprep.subr.mxu0 0.0
    %1302 = vmatpush1.msra.mxu0 0.0
    %1303 = vmatprep.subr.mxu0 0.0
    %1304 = vmatpush1.msra.mxu0 0.0
    %1305 = vmatprep.subr.mxu0 0.0
    %1306 = vmatpush1.msra.mxu0 0.0
    %1307 = vmatprep.subr.mxu0 0.0
    %1308 = vmatpush1.msra.mxu0 0.0
    %1309 = vmatprep.subr.mxu0 0.0
    %1310 = vmatpush1.msra.mxu0 0.0
    %1311 = vmatprep.subr.mxu0 0.0
    %1312 = vmatpush1.msra.mxu0 0.0
    %1313 = vmatprep.subr.mxu0 0.0
    %1314 = vmatpush1.msra.mxu0 0.0
    %1315 = vmatprep.subr.mxu0 0.0
    %1316 = vmatpush1.msra.mxu0 0.0
    %1317 = vmatprep.subr.mxu0 0.0
    %1318 = vmatpush1.msra.mxu0 0.0
    %1319 = vmatprep.subr.mxu0 0.0
    %1320 = vmatpush1.msra.mxu0 0.0
    %1321 = vmatprep.subr.mxu0 0.0
    %1322 = vmatpush1.msra.mxu0 0.0
    %1323 = vmatprep.subr.mxu0 0.0
    %1324 = vmatpush1.msra.mxu0 0.0
    %1325 = vmatprep.subr.mxu0 0.0
    %1326 = vmatpush1.msra.mxu0 0.0
    %1327 = vmatprep.subr.mxu0 0.0
    %1328 = vmatpush1.msra.mxu0 0.0
    %1329 = vmatprep.subr.mxu0 0.0
    %1330 = vmatpush1.msra.mxu0 0.0
    %1331 = vmatprep.subr.mxu0 0.0
    %1332 = vmatpush1.msra.mxu0 0.0
    %1333 = vmatprep.mubr.f32.mxu0 0.0
    %1334 = vmatmul.mubr.f32.gmra.mrb[0].mxu0 %v1267
    %v1335 = vpop.f32.mrb[0].mxu0
    %v1336 = vadd.f32 0.0, %v1335
    %v1337 = vpop.f32.mrb[0].mxu0
    %1338 = vdwg.mxu0
    %v1340 = vsel %vm167, %v1260, 0
    %v1343 = vsel %vm167, %v1336, 0
    %1345 = vmatprep.subr.mxu0 0.0
    %1346 = vmatpush1.msra.mxu0 %v162
    %1347 = vmatprep.subr.mxu0 0.0
    %1348 = vmatpush1.msra.mxu0 0.0
    %1349 = vmatprep.subr.mxu0 0.0
    %1350 = vmatpush1.msra.mxu0 0.0
    %1351 = vmatprep.subr.mxu0 0.0
    %1352 = vmatpush1.msra.mxu0 0.0
    %1353 = vmatprep.subr.mxu0 0.0
    %1354 = vmatpush1.msra.mxu0 0.0
    %1355 = vmatprep.subr.mxu0 0.0
    %1356 = vmatpush1.msra.mxu0 0.0
    %1357 = vmatprep.subr.mxu0 0.0
    %1358 = vmatpush1.msra.mxu0 0.0
    %1359 = vmatprep.subr.mxu0 0.0
    %1360 = vmatpush1.msra.mxu0 0.0
    %1361 = vmatprep.subr.mxu0 0.0
    %1362 = vmatpush1.msra.mxu0 0.0
    %1363 = vmatprep.subr.mxu0 0.0
    %1364 = vmatpush1.msra.mxu0 0.0
    %1365 = vmatprep.subr.mxu0 0.0
    %1366 = vmatpush1.msra.mxu0 0.0
    %1367 = vmatprep.subr.mxu0 0.0
    %1368 = vmatpush1.msra.mxu0 0.0
    %1369 = vmatprep.subr.mxu0 0.0
    %1370 = vmatpush1.msra.mxu0 0.0
    %1371 = vmatprep.subr.mxu0 0.0
    %1372 = vmatpush1.msra.mxu0 0.0
    %1373 = vmatprep.subr.mxu0 0.0
    %1374 = vmatpush1.msra.mxu0 0.0
    %1375 = vmatprep.subr.mxu0 0.0
    %1376 = vmatpush1.msra.mxu0 0.0
    %1377 = vmatprep.subr.mxu0 0.0
    %1378 = vmatpush1.msra.mxu0 0.0
    %1379 = vmatprep.subr.mxu0 0.0
    %1380 = vmatpush1.msra.mxu0 0.0
    %1381 = vmatprep.subr.mxu0 0.0
    %1382 = vmatpush1.msra.mxu0 0.0
    %1383 = vmatprep.subr.mxu0 0.0
    %1384 = vmatpush1.msra.mxu0 0.0
    %1385 = vmatprep.subr.mxu0 0.0
    %1386 = vmatpush1.msra.mxu0 0.0
    %1387 = vmatprep.subr.mxu0 0.0
    %1388 = vmatpush1.msra.mxu0 0.0
    %1389 = vmatprep.subr.mxu0 0.0
    %1390 = vmatpush1.msra.mxu0 0.0
    %1391 = vmatprep.subr.mxu0 0.0
    %1392 = vmatpush1.msra.mxu0 0.0
    %1393 = vmatprep.subr.mxu0 0.0
    %1394 = vmatpush1.msra.mxu0 0.0
    %1395 = vmatprep.subr.mxu0 0.0
    %1396 = vmatpush1.msra.mxu0 0.0
    %1397 = vmatprep.subr.mxu0 0.0
    %1398 = vmatpush1.msra.mxu0 0.0
    %1399 = vmatprep.subr.mxu0 0.0
    %1400 = vmatpush1.msra.mxu0 0.0
    %1401 = vmatprep.subr.mxu0 0.0
    %1402 = vmatpush1.msra.mxu0 0.0
    %1403 = vmatprep.subr.mxu0 0.0
    %1404 = vmatpush1.msra.mxu0 0.0
    %1405 = vmatprep.subr.mxu0 0.0
    %1406 = vmatpush1.msra.mxu0 0.0
    %1407 = vmatprep.subr.mxu0 0.0
    %1408 = vmatpush1.msra.mxu0 0.0
    %1409 = vmatprep.mubr.f32.mxu0 0.0
    %1410 = vmatmul.mubr.f32.gmra.mrb[0].mxu0 %v1340
    %v1411 = vpop.f32.mrb[0].mxu0
    %v1412 = vadd.f32 0.0, %v1411
    %v1413 = vpop.f32.mrb[0].mxu0
    %1414 = vmatprep.mubr.f32.mxu0 0.0
    %1415 = vmatmul.mubr.f32.gmra.mrb[0].mxu0 %v1343
    %v1416 = vpop.f32.mrb[0].mxu0
    %v1417 = vadd.f32 0.0, %v1416
    %v1418 = vpop.f32.mrb[0].mxu0
    %1419 = vdwg.mxu0
    %v1420 = vadd.f32 %v993, %v1412
    %v1421 = vadd.f32 %v998, %v1417
    %1422 = vrot.lane.b32.xlu0 %v152, 104
    %v1423 = vpop.permute.xlu0 %1422
    %1424 = vrot.lane.b32.xlu0 %v152, 72
    %v1425 = vpop.permute.xlu0 %1424
    %v1426 = vsel %vm167, %v1423, 0
    %v1428 = vsel %vm167, %v1425, 0
    %1430 = vmatprep.subr.mxu0 0.0
    %1431 = vmatpush1.xpose.msra.mxu0 %v1428
    %1432 = vmatprep.subr.mxu0 0.0
    %1433 = vmatpush1.xpose.msra.mxu0 0.0
    %1434 = vmatprep.subr.mxu0 0.0
    %1435 = vmatpush1.xpose.msra.mxu0 0.0
    %1436 = vmatprep.subr.mxu0 0.0
    %1437 = vmatpush1.xpose.msra.mxu0 0.0
    %1438 = vmatprep.subr.mxu0 0.0
    %1439 = vmatpush1.xpose.msra.mxu0 0.0
    %1440 = vmatprep.subr.mxu0 0.0
    %1441 = vmatpush1.xpose.msra.mxu0 0.0
    %1442 = vmatprep.subr.mxu0 0.0
    %1443 = vmatpush1.xpose.msra.mxu0 0.0
    %1444 = vmatprep.subr.mxu0 0.0
    %1445 = vmatpush1.xpose.msra.mxu0 0.0
    %1446 = vmatprep.subr.mxu0 0.0
    %1447 = vmatpush1.xpose.msra.mxu0 0.0
    %1448 = vmatprep.subr.mxu0 0.0
    %1449 = vmatpush1.xpose.msra.mxu0 0.0
    %1450 = vmatprep.subr.mxu0 0.0
    %1451 = vmatpush1.xpose.msra.mxu0 0.0
    %1452 = vmatprep.subr.mxu0 0.0
    %1453 = vmatpush1.xpose.msra.mxu0 0.0
    %1454 = vmatprep.subr.mxu0 0.0
    %1455 = vmatpush1.xpose.msra.mxu0 0.0
    %1456 = vmatprep.subr.mxu0 0.0
    %1457 = vmatpush1.xpose.msra.mxu0 0.0
    %1458 = vmatprep.subr.mxu0 0.0
    %1459 = vmatpush1.xpose.msra.mxu0 0.0
    %1460 = vmatprep.subr.mxu0 0.0
    %1461 = vmatpush1.xpose.msra.mxu0 0.0
    %1462 = vmatprep.subr.mxu0 0.0
    %1463 = vmatpush1.xpose.msra.mxu0 0.0
    %1464 = vmatprep.subr.mxu0 0.0
    %1465 = vmatpush1.xpose.msra.mxu0 0.0
    %1466 = vmatprep.subr.mxu0 0.0
    %1467 = vmatpush1.xpose.msra.mxu0 0.0
    %1468 = vmatprep.subr.mxu0 0.0
    %1469 = vmatpush1.xpose.msra.mxu0 0.0
    %1470 = vmatprep.subr.mxu0 0.0
    %1471 = vmatpush1.xpose.msra.mxu0 0.0
    %1472 = vmatprep.subr.mxu0 0.0
    %1473 = vmatpush1.xpose.msra.mxu0 0.0
    %1474 = vmatprep.subr.mxu0 0.0
    %1475 = vmatpush1.xpose.msra.mxu0 0.0
    %1476 = vmatprep.subr.mxu0 0.0
    %1477 = vmatpush1.xpose.msra.mxu0 0.0
    %1478 = vmatprep.subr.mxu0 0.0
    %1479 = vmatpush1.xpose.msra.mxu0 0.0
    %1480 = vmatprep.subr.mxu0 0.0
    %1481 = vmatpush1.xpose.msra.mxu0 0.0
    %1482 = vmatprep.subr.mxu0 0.0
    %1483 = vmatpush1.xpose.msra.mxu0 0.0
    %1484 = vmatprep.subr.mxu0 0.0
    %1485 = vmatpush1.xpose.msra.mxu0 0.0
    %1486 = vmatprep.subr.mxu0 0.0
    %1487 = vmatpush1.xpose.msra.mxu0 0.0
    %1488 = vmatprep.subr.mxu0 0.0
    %1489 = vmatpush1.xpose.msra.mxu0 0.0
    %1490 = vmatprep.subr.mxu0 0.0
    %1491 = vmatpush1.xpose.msra.mxu0 0.0
    %1492 = vmatprep.subr.mxu0 0.0
    %1493 = vmatpush1.xpose.msra.mxu0 0.0
    %1494 = vmatprep.mubr.f32.mxu0 0.0
    %1495 = vmatmul.mubr.f32.gmra.mrb[0].mxu0 %v1426
    %v1496 = vpop.f32.mrb[0].mxu0
    %v1497 = vadd.f32 0.0, %v1496
    %v1498 = vpop.f32.mrb[0].mxu0
    %1499 = vdwg.mxu0
    %1500 = vrot.lane.b32.xlu0 %v157, 104
    %v1501 = vpop.permute.xlu0 %1500
    %1502 = vrot.lane.b32.xlu0 %v157, 72
    %v1503 = vpop.permute.xlu0 %1502
    %v1504 = vsel %vm167, %v1501, 0
    %v1506 = vsel %vm167, %v1503, 0
    %1508 = vmatprep.subr.mxu0 0.0
    %1509 = vmatpush1.xpose.msra.mxu0 %v1506
    %1510 = vmatprep.subr.mxu0 0.0
    %1511 = vmatpush1.xpose.msra.mxu0 0.0
    %1512 = vmatprep.subr.mxu0 0.0
    %1513 = vmatpush1.xpose.msra.mxu0 0.0
    %1514 = vmatprep.subr.mxu0 0.0
    %1515 = vmatpush1.xpose.msra.mxu0 0.0
    %1516 = vmatprep.subr.mxu0 0.0
    %1517 = vmatpush1.xpose.msra.mxu0 0.0
    %1518 = vmatprep.subr.mxu0 0.0
    %1519 = vmatpush1.xpose.msra.mxu0 0.0
    %1520 = vmatprep.subr.mxu0 0.0
    %1521 = vmatpush1.xpose.msra.mxu0 0.0
    %1522 = vmatprep.subr.mxu0 0.0
    %1523 = vmatpush1.xpose.msra.mxu0 0.0
    %1524 = vmatprep.subr.mxu0 0.0
    %1525 = vmatpush1.xpose.msra.mxu0 0.0
    %1526 = vmatprep.subr.mxu0 0.0
    %1527 = vmatpush1.xpose.msra.mxu0 0.0
    %1528 = vmatprep.subr.mxu0 0.0
    %1529 = vmatpush1.xpose.msra.mxu0 0.0
    %1530 = vmatprep.subr.mxu0 0.0
    %1531 = vmatpush1.xpose.msra.mxu0 0.0
    %1532 = vmatprep.subr.mxu0 0.0
    %1533 = vmatpush1.xpose.msra.mxu0 0.0
    %1534 = vmatprep.subr.mxu0 0.0
    %1535 = vmatpush1.xpose.msra.mxu0 0.0
    %1536 = vmatprep.subr.mxu0 0.0
    %1537 = vmatpush1.xpose.msra.mxu0 0.0
    %1538 = vmatprep.subr.mxu0 0.0
    %1539 = vmatpush1.xpose.msra.mxu0 0.0
    %1540 = vmatprep.subr.mxu0 0.0
    %1541 = vmatpush1.xpose.msra.mxu0 0.0
    %1542 = vmatprep.subr.mxu0 0.0
    %1543 = vmatpush1.xpose.msra.mxu0 0.0
    %1544 = vmatprep.subr.mxu0 0.0
    %1545 = vmatpush1.xpose.msra.mxu0 0.0
    %1546 = vmatprep.subr.mxu0 0.0
    %1547 = vmatpush1.xpose.msra.mxu0 0.0
    %1548 = vmatprep.subr.mxu0 0.0
    %1549 = vmatpush1.xpose.msra.mxu0 0.0
    %1550 = vmatprep.subr.mxu0 0.0
    %1551 = vmatpush1.xpose.msra.mxu0 0.0
    %1552 = vmatprep.subr.mxu0 0.0
    %1553 = vmatpush1.xpose.msra.mxu0 0.0
    %1554 = vmatprep.subr.mxu0 0.0
    %1555 = vmatpush1.xpose.msra.mxu0 0.0
    %1556 = vmatprep.subr.mxu0 0.0
    %1557 = vmatpush1.xpose.msra.mxu0 0.0
    %1558 = vmatprep.subr.mxu0 0.0
    %1559 = vmatpush1.xpose.msra.mxu0 0.0
    %1560 = vmatprep.subr.mxu0 0.0
    %1561 = vmatpush1.xpose.msra.mxu0 0.0
    %1562 = vmatprep.subr.mxu0 0.0
    %1563 = vmatpush1.xpose.msra.mxu0 0.0
    %1564 = vmatprep.subr.mxu0 0.0
    %1565 = vmatpush1.xpose.msra.mxu0 0.0
    %1566 = vmatprep.subr.mxu0 0.0
    %1567 = vmatpush1.xpose.msra.mxu0 0.0
    %1568 = vmatprep.subr.mxu0 0.0
    %1569 = vmatpush1.xpose.msra.mxu0 0.0
    %1570 = vmatprep.subr.mxu0 0.0
    %1571 = vmatpush1.xpose.msra.mxu0 0.0
    %1572 = vmatprep.mubr.f32.mxu0 0.0
    %1573 = vmatmul.mubr.f32.gmra.mrb[0].mxu0 %v1504
    %v1574 = vpop.f32.mrb[0].mxu0
    %v1575 = vadd.f32 0.0, %v1574
    %v1576 = vpop.f32.mrb[0].mxu0
    %1577 = vdwg.mxu0
    %v1578 = vsel %vm167, %v1497, -inf
    %1579 = vmax.xlane.f32.xlu0 %v1578
    %v1580 = vpop.xlane.xlu0 %1579
    %v1581 = vsel %vm167, %v1575, -inf
    %1582 = vmax.xlane.f32.xlu0 %v1581
    %v1583 = vpop.xlane.xlu0 %1582
    %v1584 = vsub.f32 %v1497, %v1580
    %v1585 = vsub.f32 %v1575, %v1583
    %v1586 = vmul.f32 %v1584, 1.442695
    %v1587 = vpow.pop %v1586
    %v1588 = vmul.f32 %v1585, 1.442695
    %v1589 = vpow.pop %v1588
    %v1590 = vsel %vm167, %v1587, 0.0
    %1591 = vadd.xlane.f32.xlu0 %v1590
    %v1592 = vpop.xlane.xlu0 %1591
    %v1593 = vsel %vm167, %v1589, 0.0
    %1594 = vadd.xlane.f32.xlu0 %v1593
    %v1595 = vpop.xlane.xlu0 %1594
    %v1596 = vrcp.pop %v1592
    %v1597 = vrcp.pop %v1595
    %v1598 = vmul.f32 %v1592, %v1596
    %v1599 = vmul.f32 %v1595, %v1597
    %v1600 = vsub.f32 2.0, %v1598
    %v1601 = vsub.f32 2.0, %v1599
    %v1602 = vmul.f32 %v1596, %v1600
    %v1603 = vmul.f32 %v1597, %v1601
    %v1604 = vmul.f32 %v1587, %v1602
    %v1605 = vmul.f32 %v1589, %v1603
    %v1606 = vadd.f32 %v1185, %v1604
    %v1607 = vadd.f32 %v1186, %v1605
    %1608 = vrot.lane.b32.xlu0 %v152, 40
    %v1609 = vpop.permute.xlu0 %1608
    %v1612 = vsel %vm167, %v1604, 0
    %1614 = vmatprep.subr.mxu0 0.0
    %1615 = vmatpush1.msra.mxu0 %v1609
    %1616 = vmatprep.subr.mxu0 0.0
    %1617 = vmatpush1.msra.mxu0 0.0
    %1618 = vmatprep.subr.mxu0 0.0
    %1619 = vmatpush1.msra.mxu0 0.0
    %1620 = vmatprep.subr.mxu0 0.0
    %1621 = vmatpush1.msra.mxu0 0.0
    %1622 = vmatprep.subr.mxu0 0.0
    %1623 = vmatpush1.msra.mxu0 0.0
    %1624 = vmatprep.subr.mxu0 0.0
    %1625 = vmatpush1.msra.mxu0 0.0
    %1626 = vmatprep.subr.mxu0 0.0
    %1627 = vmatpush1.msra.mxu0 0.0
    %1628 = vmatprep.subr.mxu0 0.0
    %1629 = vmatpush1.msra.mxu0 0.0
    %1630 = vmatprep.subr.mxu0 0.0
    %1631 = vmatpush1.msra.mxu0 0.0
    %1632 = vmatprep.subr.mxu0 0.0
    %1633 = vmatpush1.msra.mxu0 0.0
    %1634 = vmatprep.subr.mxu0 0.0
    %1635 = vmatpush1.msra.mxu0 0.0
    %1636 = vmatprep.subr.mxu0 0.0
    %1637 = vmatpush1.msra.mxu0 0.0
    %1638 = vmatprep.subr.mxu0 0.0
    %1639 = vmatpush1.msra.mxu0 0.0
    %1640 = vmatprep.subr.mxu0 0.0
    %1641 = vmatpush1.msra.mxu0 0.0
    %1642 = vmatprep.subr.mxu0 0.0
    %1643 = vmatpush1.msra.mxu0 0.0
    %1644 = vmatprep.subr.mxu0 0.0
    %1645 = vmatpush1.msra.mxu0 0.0
    %1646 = vmatprep.subr.mxu0 0.0
    %1647 = vmatpush1.msra.mxu0 0.0
    %1648 = vmatprep.subr.mxu0 0.0
    %1649 = vmatpush1.msra.mxu0 0.0
    %1650 = vmatprep.subr.mxu0 0.0
    %1651 = vmatpush1.msra.mxu0 0.0
    %1652 = vmatprep.subr.mxu0 0.0
    %1653 = vmatpush1.msra.mxu0 0.0
    %1654 = vmatprep.subr.mxu0 0.0
    %1655 = vmatpush1.msra.mxu0 0.0
    %1656 = vmatprep.subr.mxu0 0.0
    %1657 = vmatpush1.msra.mxu0 0.0
    %1658 = vmatprep.subr.mxu0 0.0
    %1659 = vmatpush1.msra.mxu0 0.0
    %1660 = vmatprep.subr.mxu0 0.0
    %1661 = vmatpush1.msra.mxu0 0.0
    %1662 = vmatprep.subr.mxu0 0.0
    %1663 = vmatpush1.msra.mxu0 0.0
    %1664 = vmatprep.subr.mxu0 0.0
    %1665 = vmatpush1.msra.mxu0 0.0
    %1666 = vmatprep.subr.mxu0 0.0
    %1667 = vmatpush1.msra.mxu0 0.0
    %1668 = vmatprep.subr.mxu0 0.0
    %1669 = vmatpush1.msra.mxu0 0.0
    %1670 = vmatprep.subr.mxu0 0.0
    %1671 = vmatpush1.msra.mxu0 0.0
    %1672 = vmatprep.subr.mxu0 0.0
    %1673 = vmatpush1.msra.mxu0 0.0
    %1674 = vmatprep.subr.mxu0 0.0
    %1675 = vmatpush1.msra.mxu0 0.0
    %1676 = vmatprep.subr.mxu0 0.0
    %1677 = vmatpush1.msra.mxu0 0.0
    %1678 = vmatprep.mubr.f32.mxu0 0.0
    %1679 = vmatmul.mubr.f32.gmra.mrb[0].mxu0 %v1612
    %v1680 = vpop.f32.mrb[0].mxu0
    %v1681 = vadd.f32 0.0, %v1680
    %v1682 = vpop.f32.mrb[0].mxu0
    %1683 = vdwg.mxu0
    %1684 = vrot.lane.b32.xlu0 %v157, 40
    %v1685 = vpop.permute.xlu0 %1684
    %v1688 = vsel %vm167, %v1605, 0
    %1690 = vmatprep.subr.mxu0 0.0
    %1691 = vmatpush1.msra.mxu0 %v1685
    %1692 = vmatprep.subr.mxu0 0.0
    %1693 = vmatpush1.msra.mxu0 0.0
    %1694 = vmatprep.subr.mxu0 0.0
    %1695 = vmatpush1.msra.mxu0 0.0
    %1696 = vmatprep.subr.mxu0 0.0
    %1697 = vmatpush1.msra.mxu0 0.0
    %1698 = vmatprep.subr.mxu0 0.0
    %1699 = vmatpush1.msra.mxu0 0.0
    %1700 = vmatprep.subr.mxu0 0.0
    %1701 = vmatpush1.msra.mxu0 0.0
    %1702 = vmatprep.subr.mxu0 0.0
    %1703 = vmatpush1.msra.mxu0 0.0
    %1704 = vmatprep.subr.mxu0 0.0
    %1705 = vmatpush1.msra.mxu0 0.0
    %1706 = vmatprep.subr.mxu0 0.0
    %1707 = vmatpush1.msra.mxu0 0.0
    %1708 = vmatprep.subr.mxu0 0.0
    %1709 = vmatpush1.msra.mxu0 0.0
    %1710 = vmatprep.subr.mxu0 0.0
    %1711 = vmatpush1.msra.mxu0 0.0
    %1712 = vmatprep.subr.mxu0 0.0
    %1713 = vmatpush1.msra.mxu0 0.0
    %1714 = vmatprep.subr.mxu0 0.0
    %1715 = vmatpush1.msra.mxu0 0.0
    %1716 = vmatprep.subr.mxu0 0.0
    %1717 = vmatpush1.msra.mxu0 0.0
    %1718 = vmatprep.subr.mxu0 0.0
    %1719 = vmatpush1.msra.mxu0 0.0
    %1720 = vmatprep.subr.mxu0 0.0
    %1721 = vmatpush1.msra.mxu0 0.0
    %1722 = vmatprep.subr.mxu0 0.0
    %1723 = vmatpush1.msra.mxu0 0.0
    %1724 = vmatprep.subr.mxu0 0.0
    %1725 = vmatpush1.msra.mxu0 0.0
    %1726 = vmatprep.subr.mxu0 0.0
    %1727 = vmatpush1.msra.mxu0 0.0
    %1728 = vmatprep.subr.mxu0 0.0
    %1729 = vmatpush1.msra.mxu0 0.0
    %1730 = vmatprep.subr.mxu0 0.0
    %1731 = vmatpush1.msra.mxu0 0.0
    %1732 = vmatprep.subr.mxu0 0.0
    %1733 = vmatpush1.msra.mxu0 0.0
    %1734 = vmatprep.subr.mxu0 0.0
    %1735 = vmatpush1.msra.mxu0 0.0
    %1736 = vmatprep.subr.mxu0 0.0
    %1737 = vmatpush1.msra.mxu0 0.0
    %1738 = vmatprep.subr.mxu0 0.0
    %1739 = vmatpush1.msra.mxu0 0.0
    %1740 = vmatprep.subr.mxu0 0.0
    %1741 = vmatpush1.msra.mxu0 0.0
    %1742 = vmatprep.subr.mxu0 0.0
    %1743 = vmatpush1.msra.mxu0 0.0
    %1744 = vmatprep.subr.mxu0 0.0
    %1745 = vmatpush1.msra.mxu0 0.0
    %1746 = vmatprep.subr.mxu0 0.0
    %1747 = vmatpush1.msra.mxu0 0.0
    %1748 = vmatprep.subr.mxu0 0.0
    %1749 = vmatpush1.msra.mxu0 0.0
    %1750 = vmatprep.subr.mxu0 0.0
    %1751 = vmatpush1.msra.mxu0 0.0
    %1752 = vmatprep.subr.mxu0 0.0
    %1753 = vmatpush1.msra.mxu0 0.0
    %1754 = vmatprep.mubr.f32.mxu0 0.0
    %1755 = vmatmul.mubr.f32.gmra.mrb[0].mxu0 %v1688
    %v1756 = vpop.f32.mrb[0].mxu0
    %v1757 = vadd.f32 0.0, %v1756
    %v1758 = vpop.f32.mrb[0].mxu0
    %1759 = vdwg.mxu0
    %v1761 = vsel %vm167, %v1681, 0
    %v1764 = vsel %vm167, %v1757, 0
    %1766 = vmatprep.subr.mxu0 0.0
    %1767 = vmatpush1.msra.mxu0 %v163
    %1768 = vmatprep.subr.mxu0 0.0
    %1769 = vmatpush1.msra.mxu0 0.0
    %1770 = vmatprep.subr.mxu0 0.0
    %1771 = vmatpush1.msra.mxu0 0.0
    %1772 = vmatprep.subr.mxu0 0.0
    %1773 = vmatpush1.msra.mxu0 0.0
    %1774 = vmatprep.subr.mxu0 0.0
    %1775 = vmatpush1.msra.mxu0 0.0
    %1776 = vmatprep.subr.mxu0 0.0
    %1777 = vmatpush1.msra.mxu0 0.0
    %1778 = vmatprep.subr.mxu0 0.0
    %1779 = vmatpush1.msra.mxu0 0.0
    %1780 = vmatprep.subr.mxu0 0.0
    %1781 = vmatpush1.msra.mxu0 0.0
    %1782 = vmatprep.subr.mxu0 0.0
    %1783 = vmatpush1.msra.mxu0 0.0
    %1784 = vmatprep.subr.mxu0 0.0
    %1785 = vmatpush1.msra.mxu0 0.0
    %1786 = vmatprep.subr.mxu0 0.0
    %1787 = vmatpush1.msra.mxu0 0.0
    %1788 = vmatprep.subr.mxu0 0.0
    %1789 = vmatpush1.msra.mxu0 0.0
    %1790 = vmatprep.subr.mxu0 0.0
    %1791 = vmatpush1.msra.mxu0 0.0
    %1792 = vmatprep.subr.mxu0 0.0
    %1793 = vmatpush1.msra.mxu0 0.0
    %1794 = vmatprep.subr.mxu0 0.0
    %1795 = vmatpush1.msra.mxu0 0.0
    %1796 = vmatprep.subr.mxu0 0.0
    %1797 = vmatpush1.msra.mxu0 0.0
    %1798 = vmatprep.subr.mxu0 0.0
    %1799 = vmatpush1.msra.mxu0 0.0
    %1800 = vmatprep.subr.mxu0 0.0
    %1801 = vmatpush1.msra.mxu0 0.0
    %1802 = vmatprep.subr.mxu0 0.0
    %1803 = vmatpush1.msra.mxu0 0.0
    %1804 = vmatprep.subr.mxu0 0.0
    %1805 = vmatpush1.msra.mxu0 0.0
    %1806 = vmatprep.subr.mxu0 0.0
    %1807 = vmatpush1.msra.mxu0 0.0
    %1808 = vmatprep.subr.mxu0 0.0
    %1809 = vmatpush1.msra.mxu0 0.0
    %1810 = vmatprep.subr.mxu0 0.0
    %1811 = vmatpush1.msra.mxu0 0.0
    %1812 = vmatprep.subr.mxu0 0.0
    %1813 = vmatpush1.msra.mxu0 0.0
    %1814 = vmatprep.subr.mxu0 0.0
    %1815 = vmatpush1.msra.mxu0 0.0
    %1816 = vmatprep.subr.mxu0 0.0
    %1817 = vmatpush1.msra.mxu0 0.0
    %1818 = vmatprep.subr.mxu0 0.0
    %1819 = vmatpush1.msra.mxu0 0.0
    %1820 = vmatprep.subr.mxu0 0.0
    %1821 = vmatpush1.msra.mxu0 0.0
    %1822 = vmatprep.subr.mxu0 0.0
    %1823 = vmatpush1.msra.mxu0 0.0
    %1824 = vmatprep.subr.mxu0 0.0
    %1825 = vmatpush1.msra.mxu0 0.0
    %1826 = vmatprep.subr.mxu0 0.0
    %1827 = vmatpush1.msra.mxu0 0.0
    %1828 = vmatprep.subr.mxu0 0.0
    %1829 = vmatpush1.msra.mxu0 0.0
    %1830 = vmatprep.mubr.f32.mxu0 0.0
    %1831 = vmatmul.mubr.f32.gmra.mrb[0].mxu0 %v1761
    %v1832 = vpop.f32.mrb[0].mxu0
    %v1833 = vadd.f32 0.0, %v1832
    %v1834 = vpop.f32.mrb[0].mxu0
    %1835 = vmatprep.mubr.f32.mxu0 0.0
    %1836 = vmatmul.mubr.f32.gmra.mrb[0].mxu0 %v1764
    %v1837 = vpop.f32.mrb[0].mxu0
    %v1838 = vadd.f32 0.0, %v1837
    %v1839 = vpop.f32.mrb[0].mxu0
    %1840 = vdwg.mxu0
    %v1841 = vadd.f32 %v1420, %v1833
    %v1842 = vadd.f32 %v1421, %v1838
    %v1843 = vld [vmem:[%s4] sm:$0x1]
    %v1845 = vlaneseq
    %v1846 = vshrl.u32 %v1845, 7
    %v1847 = vsub.s32 0, %v1846
    %v1848 = vrot.slane %v1843, %v1847
    %v1850 = vadd.f32 %v1841, %v1848
    %v1851 = vadd.f32 %v1842, %v1848
    %1852 = vst.msk [vmem:[#allocation8] sm:$0xff] %vm78, %v1850
    %1853 = vst.msk [vmem:[#allocation8 + $0x8] sm:$0xff] %vm78, %v1851
    %v1854 = vmul.f32 %v1606, 0.25
    %v1855 = vmul.f32 %v1607, 0.25
    %1856 = vst.msk [vmem:[#allocation9] sm:$0xff] %vm167, %v1854
    %1857 = vst.msk [vmem:[#allocation9 + $0x8] sm:$0xff] %vm167, %v1855
    // Predicated region
    $region34: #{tpu_custom_call.1} parent=1 // pred_check
      _
    $region35: #{tpu_custom_call.1} parent=1 // pred_check_branch
      %1859 = sbr.rel (0) target = $region37
    $region36: #{tpu_custom_call.1} parent=1 // pred_region
      %s1861 = ssub.s32 256, 256
      %1862 = vsyncadd [#allocation4], %s1861
      %s1863 = sshll.u32 [#allocation8], 4
      %s1864 = int_to_ptr.vmem [resolvable:$true] %s1863
      %1869 = dma.vmem_to_hbm [thread:$0]  %s1864, 256, %s5, [#allocation4], 128, 128, 8
    $region37: #{tpu_custom_call.1} parent=1 // pred_fallthru
      _
    // Predicated region
    $region38: #{tpu_custom_call.1} parent=1 // pred_check
      _
    $region39: #{tpu_custom_call.1} parent=1 // pred_check_branch
      %1871 = sbr.rel (0) target = $region41
    $region40: #{tpu_custom_call.1} parent=1 // pred_region
      %s1873 = ssub.s32 256, 256
      %1874 = vsyncadd [#allocation10], %s1873
      %s1875 = sshll.u32 [#allocation9], 4
      %s1876 = int_to_ptr.vmem [resolvable:$true] %s1875
      %1881 = dma.vmem_to_hbm [thread:$0]  %s1876, 256, %s6, [#allocation10], 128, 128, 8
    $region41: #{tpu_custom_call.1} parent=1 // pred_fallthru
      _
    // Predicated region
    $region42: #{tpu_custom_call.1} parent=1 // pred_check
      _
    $region43: #{tpu_custom_call.1} parent=1 // pred_check_branch
      %1883 = sbr.rel (0) target = $region45
    $region44: #{tpu_custom_call.1} parent=1 // pred_region
      %1884 = dma.done [#allocation4], 256
    $region45: #{tpu_custom_call.1} parent=1 // pred_fallthru
      _
    // Predicated region
    $region46: #{tpu_custom_call.1} parent=1 // pred_check
      _
    $region47: #{tpu_custom_call.1} parent=1 // pred_check_branch
      %1886 = sbr.rel (0) target = $region49
    $region48: #{tpu_custom_call.1} parent=1 // pred_region
      %1887 = dma.done [#allocation10], 256
    $region49: #{tpu_custom_call.1} parent=1 // pred_fallthru
      _
    %1888 = vsyncpa [#allocation3], 1
    %1889 = vsyncpa [#allocation6], 1
    %1890 = vsyncpa [#allocation4], 1
    %1891 = vsyncpa [#allocation10], 1

</llo_original>
